<compile_context>
chip_gen: v7x
topology: tpu7x:2x2x1
jax: 0.10.0
libtpu: 0.0.40
codegen_flags: <defaults>
</compile_context>

<pallas_src>
import functools

import jax
import jax.numpy as jnp
from jax.experimental import pallas as pl
from jax.experimental.pallas import tpu as pltpu


# ----------------------------------------------------------------------------
# Hardware-aware budgets
# ----------------------------------------------------------------------------
def _vmem_capacity_bytes():
    try:
        info = pltpu.get_tpu_info()
        for name in ("vmem_capacity_bytes", "vmem_size_bytes", "vmem_bytes"):
            v = getattr(info, name, None)
            if v:
                return int(v)
    except Exception:
        pass
    return 64 * 1024 * 1024                      # conservative (v7x per-TC)


_VMEM_CAP = _vmem_capacity_bytes()
_VMEM_LIMIT = min(int(_VMEM_CAP * 3 // 4), 112 * 1024 * 1024)
_SLAB_BUDGET = max(4 * 1024 * 1024, min(_VMEM_LIMIT // 6, 20 * 1024 * 1024))

_FOLD_K_MAX = 1024        # T*Cin <= this  -> tap-folded GEMM path
_FUSE_MIN_ROWS = 512      # min output voxels for the fused direct-conv path
_MAX_PAD_WASTE = 0.55     # max tolerated fraction of padded-border rows (fused)


def _round_up(x, m):
    return ((x + m - 1) // m) * m


def _cout_pad(cout):
    # Lane-dense outputs: pad Cout up to a multiple of 128 (feedback item).
    return _round_up(max(cout, 128), 128)


def _cout_tile(cp):
    return 256 if cp % 256 == 0 else 128


# ----------------------------------------------------------------------------
# Probe: can Mosaic slice a bf16 VMEM ref at an odd sublane offset?
# (Decides whether the fused-conv slab is bf16 or f32.)
# ----------------------------------------------------------------------------
_BF16_SLAB = None


def _probe_bf16_subslice():
    def kern(x_ref, w_ref, o_ref):
        a = x_ref[pl.ds(3, 8), :]
        o_ref[...] = jnp.dot(a, w_ref[...], preferred_element_type=jnp.float32)

    try:
        x = jnp.ones((24, 128), jnp.bfloat16)
        w = jnp.ones((128, 128), jnp.bfloat16)
        out = pl.pallas_call(
            kern,
            out_shape=jax.ShapeDtypeStruct((8, 128), jnp.float32),
            in_specs=[pl.BlockSpec(memory_space=pltpu.MemorySpace.VMEM),
                      pl.BlockSpec(memory_space=pltpu.MemorySpace.VMEM)],
            out_specs=pl.BlockSpec(memory_space=pltpu.MemorySpace.VMEM),
        )(x, w)
        jax.block_until_ready(out)
        return True
    except Exception:
        return False


def _slab_dtype():
    global _BF16_SLAB
    if _BF16_SLAB is None:
        _BF16_SLAB = _probe_bf16_subslice()
    return jnp.bfloat16 if _BF16_SLAB else jnp.float32


# ----------------------------------------------------------------------------
# Pallas kernel 1: fused direct conv (stride 1, large K).
# Grid = (Cout tiles [outer, parallel], row tiles [inner, arbitrary]).
# Manual double-buffered slab DMA with next-row prefetch; taps are static
# row-offset slices of the slab, each feeding an MXU dot into an f32 acc.
# ----------------------------------------------------------------------------
def _conv_fused_kernel(taps, tm, slab_rows,
                       x_hbm, w_ref, b_ref, o_ref, slab_ref, acc_ref, sem):
    i = pl.program_id(1)                       # row tile (inner axis)
    nrow = pl.num_programs(1)
    slot = i % 2

    def _start(row_idx, slot_idx):
        start = row_idx * tm
        if not isinstance(start, int):
            start = pl.multiple_of(start, 8)
        pltpu.make_async_copy(x_hbm.at[pl.ds(start, slab_rows)],
                              slab_ref.at[slot_idx],
                              sem.at[slot_idx]).start()

    @pl.when(i == 0)                           # first row of this Cout sweep
    def _():
        _start(0, 0)

    @pl.when(i + 1 < nrow)                     # prefetch next row tile
    def _():
        _start(i + 1, 1 - slot)

    pltpu.make_async_copy(x_hbm.at[pl.ds(0, slab_rows)],
                          slab_ref.at[slot],
                          sem.at[slot]).wait()

    acc_ref[...] = jnp.zeros_like(acc_ref)
    for t, off in enumerate(taps):             # statically unrolled k^3 taps
        a = slab_ref[slot, pl.ds(off, tm), :].astype(jnp.bfloat16)
        acc_ref[...] += jnp.dot(a, w_ref[t],
                                preferred_element_type=jnp.float32)
    o_ref[...] = (acc_ref[...] + b_ref[...]).astype(o_ref.dtype)


def _fused_tm(hp, wp, cin, halo, r_core, itemsize):
    rows_cap = _SLAB_BUDGET // (itemsize * max(cin, 1)) - halo
    tgt = max(1024, 2 * hp * wp)
    tm = min(tgt, max(rows_cap, 256), 16384)
    tm = max(tm, 256)
    tm = min(tm, _round_up(r_core, 8))
    return max(8, _round_up(tm, 8))


def _conv_fused(xp, w3, b2, kdims, odims):
    """xp: (N,Dp,Hp,Wp,Cin) bf16 padded input; w3: (T,Cin,Cp) bf16; b2: (1,Cp)."""
    N, Dp, Hp, Wp, Cin = xp.shape
    kd, kh, kw = kdims
    Do, Ho, Wo = odims
    T, _, Cp = w3.shape
    taps = tuple(i * Hp * Wp + j * Wp + l
                 for i in range(kd) for j in range(kh) for l in range(kw))
    halo = taps[-1]
    r_core = N * Dp * Hp * Wp

    sdt = _slab_dtype()
    itemsize = 2 if sdt == jnp.bfloat16 else 4
    tm = _fused_tm(Hp, Wp, Cin, halo, r_core, itemsize)
    slab_rows = tm + halo
    tn = _cout_tile(Cp)

    need = (2 * slab_rows * Cin * itemsize + 2 * T * Cin * tn * 2
            + tm * tn * 4 + 2 * tm * tn * 2 + 2 * tn * 4)
    if need > _VMEM_LIMIT:
        raise ValueError("fused conv tile does not fit VMEM")

    r_out = _round_up(r_core, tm)
    extra = r_out + halo - r_core
    x_flat = xp.reshape(r_core, Cin).astype(sdt)
    if extra > 0:
        x_flat = jnp.pad(x_flat, ((0, extra), (0, 0)))

    grid = (Cp // tn, r_out // tm)             # col outer -> weights DMA'd once/col
    kern = functools.partial(_conv_fused_kernel, taps, tm, slab_rows)
    flops = 2 * r_out * Cp * Cin * T
    bytes_accessed = (grid[0] * grid[1] * slab_rows * Cin * itemsize
                      + grid[0] * T * Cin * tn * 2 + r_out * Cp * 2)

    y = pl.pallas_call(
        kern,
        out_shape=jax.ShapeDtypeStruct((r_out, Cp), jnp.bfloat16),
        grid_spec=pltpu.PrefetchScalarGridSpec(
            num_scalar_prefetch=0,
            grid=grid,
            in_specs=[pl.BlockSpec(memory_space=pl.ANY),
                      pl.BlockSpec((T, Cin, tn), lambda j, i: (0, 0, j)),
                      pl.BlockSpec((1, tn), lambda j, i: (0, j))],
            out_specs=pl.BlockSpec((tm, tn), lambda j, i: (i, j)),
            scratch_shapes=[pltpu.VMEM((2, slab_rows, Cin), sdt),
                            pltpu.VMEM((tm, tn), jnp.float32),
                            pltpu.SemaphoreType.DMA((2,))]),
        compiler_params=pltpu.CompilerParams(
            dimension_semantics=("parallel", "arbitrary"),
            vmem_limit_bytes=_VMEM_LIMIT),
        cost_estimate=pl.CostEstimate(flops=int(flops), transcendentals=0,
                                      bytes_accessed=int(bytes_accessed)),
    )(x_flat, w3, b2)

    y = y[:r_core].reshape(N, Dp, Hp, Wp, Cp)
    return y[:, :Do, :Ho, :Wo, :]


# ----------------------------------------------------------------------------
# Pallas kernel 2: tap-FOLDED GEMM  (strided / tiny / small-K convs).
# A = (M, T*Cin) bf16, W = (T*Cin, Cp) bf16, bias fused in the finalize step.
# ----------------------------------------------------------------------------
def _gemm_bias_kernel(a_ref, w_ref, b_ref, o_ref, acc_ref):
    k = pl.program_id(2)

    @pl.when(k == 0)
    def _init():
        acc_ref[...] = jnp.zeros_like(acc_ref)

    acc_ref[...] += jnp.dot(a_ref[...], w_ref[...],
                            preferred_element_type=jnp.float32)

    @pl.when(k == pl.num_programs(2) - 1)
    def _finalize():
        o_ref[...] = (acc_ref[...] + b_ref[...]).astype(o_ref.dtype)


def _conv_stacked(xp, w3, b2, kdims, stride, odims):
    N, Dp, Hp, Wp, Cin = xp.shape
    kd, kh, kw = kdims
    Do, Ho, Wo = odims
    T, _, Cp = w3.shape
    s = stride

    taps = []
    for i in range(kd):
        for j in range(kh):
            for l in range(kw):
                taps.append(xp[:, i:i + s * (Do - 1) + 1:s,
                                  j:j + s * (Ho - 1) + 1:s,
                                  l:l + s * (Wo - 1) + 1:s, :])
    M = N * Do * Ho * Wo
    K = T * Cin
    A = taps[0] if T == 1 else jnp.concatenate(taps, axis=-1)
    A = A.reshape(M, K).astype(jnp.bfloat16)
    W = w3.reshape(K, Cp)

    if K <= 2048:
        tk, Kp = K, K
    else:
        tk = 2048
        Kp = _round_up(K, tk)
        A = jnp.pad(A, ((0, 0), (0, Kp - K)))
        W = jnp.pad(W, ((0, Kp - K), (0, 0)))

    tm = min(1024, _round_up(M, 8))
    Mp = _round_up(M, tm)
    if Mp > M:
        A = jnp.pad(A, ((0, Mp - M), (0, 0)))

    tn = _cout_tile(Cp)
    grid = (Mp // tm, Cp // tn, Kp // tk)
    flops = 2 * Mp * Cp * Kp
    bytes_accessed = (Mp * Kp * 2 * (Cp // tn) + Kp * Cp * 2 * (Mp // tm)
                      + Mp * Cp * 2)

    y = pl.pallas_call(
        _gemm_bias_kernel,
        out_shape=jax.ShapeDtypeStruct((Mp, Cp), jnp.bfloat16),
        grid_spec=pltpu.PrefetchScalarGridSpec(
            num_scalar_prefetch=0,
            grid=grid,
            in_specs=[pl.BlockSpec((tm, tk), lambda i, j, k: (i, k)),
                      pl.BlockSpec((tk, tn), lambda i, j, k: (k, j)),
                      pl.BlockSpec((1, tn), lambda i, j, k: (0, j))],
            out_specs=pl.BlockSpec((tm, tn), lambda i, j, k: (i, j)),
            scratch_shapes=[pltpu.VMEM((tm, tn), jnp.float32)]),
        compiler_params=pltpu.CompilerParams(
            dimension_semantics=("parallel", "parallel", "arbitrary"),
            vmem_limit_bytes=_VMEM_LIMIT),
        cost_estimate=pl.CostEstimate(flops=int(flops), transcendentals=0,
                                      bytes_accessed=int(bytes_accessed)),
    )(A, W, b2)
    return y[:M].reshape(N, Do, Ho, Wo, Cp)


# ----------------------------------------------------------------------------
# Conv3d front-end (channels-last).  w: (kd, kh, kw, Cin, Cout), b: (Cout,)
# ----------------------------------------------------------------------------
def conv3d(x, w, b, stride=1, padding=0):
    x = x.astype(jnp.bfloat16)
    N, D, H, W, Cin = x.shape
    kd, kh, kw, Cin2, Cout = w.shape
    assert Cin2 == Cin
    if isinstance(padding, int):
        pads = ((padding, padding),) * 3
    else:
        pads = tuple(tuple(p) for p in padding)
    xp = jnp.pad(x, ((0, 0),) + pads + ((0, 0),))
    Dp, Hp, Wp = xp.shape[1:4]
    Do = (Dp - kd) // stride + 1
    Ho = (Hp - kh) // stride + 1
    Wo = (Wp - kw) // stride + 1
    T = kd * kh * kw

    Cp = _cout_pad(Cout)                       # lane-dense output channels
    w3 = w.reshape(T, Cin, Cout).astype(jnp.bfloat16)
    b2 = b.reshape(1, Cout).astype(jnp.float32)
    if Cp > Cout:
        w3 = jnp.pad(w3, ((0, 0), (0, 0), (0, Cp - Cout)))
        b2 = jnp.pad(b2, ((0, 0), (0, Cp - Cout)))

    M = N * Do * Ho * Wo
    waste = 1.0 - float(Do * Ho * Wo) / float(Dp * Hp * Wp)
    use_fused = (stride == 1 and T * Cin > _FOLD_K_MAX
                 and M >= _FUSE_MIN_ROWS and waste <= _MAX_PAD_WASTE)
    if use_fused:
        try:
            y = _conv_fused(xp, w3, b2, (kd, kh, kw), (Do, Ho, Wo))
        except Exception:
            # TODO(synk): fallback only guards rare Mosaic lowering gaps; the
            # folded GEMM is numerically identical (extra im2col HBM traffic).
            y = _conv_stacked(xp, w3, b2, (kd, kh, kw), 1, (Do, Ho, Wo))
    else:
        y = _conv_stacked(xp, w3, b2, (kd, kh, kw), stride, (Do, Ho, Wo))
    return y[..., :Cout]


# ----------------------------------------------------------------------------
# ConvTranspose3d(k=3, s=2, p=1, op=1) via 8-phase decomposition; the phase
# interleave is a jitted in-place scatter (no stack + 8-D transpose).
# ----------------------------------------------------------------------------
@jax.jit
def _interleave8(phases):
    y0 = phases[0]
    N, D, H, W, C = y0.shape
    out = jnp.zeros((N, D, 2, H, 2, W, 2, C), y0.dtype)
    idx = 0
    for pd in (0, 1):
        for ph in (0, 1):
            for pw in (0, 1):
                out = out.at[:, :, pd, :, ph, :, pw, :].set(phases[idx])
                idx += 1
    return out.reshape(N, 2 * D, 2 * H, 2 * W, C)


def conv_transpose3d_s2(x, w_pt, b):
    """x: (N,D,H,W,Cin); w_pt (PyTorch layout): (Cin, Cout, 3, 3, 3)."""
    assert w_pt.shape[2:] == (3, 3, 3)
    # equivalent-conv (flipped) weights: (3,3,3,Cin,Cout)
    wf = jnp.transpose(w_pt[:, :, ::-1, ::-1, ::-1], (2, 3, 4, 0, 1))
    idx = {0: (1,), 1: (0, 2)}   # per-axis flipped-tap indices per output phase
    phase_outs = []
    for pd in (0, 1):
        for ph in (0, 1):
            for pw in (0, 1):
                wp = jnp.take(wf, jnp.array(idx[pd]), axis=0)
                wp = jnp.take(wp, jnp.array(idx[ph]), axis=1)
                wp = jnp.take(wp, jnp.array(idx[pw]), axis=2)
                y = conv3d(x, wp, b, stride=1,
                           padding=((0, pd), (0, ph), (0, pw)))
                phase_outs.append(y.astype(jnp.bfloat16))
    return _interleave8(tuple(phase_outs))


# ----------------------------------------------------------------------------
# Pallas kernel 3: InstanceNorm3d(affine=False, eps=1e-5) + PReLU.
# Two-pass: f32 stats via XLA reduction, tiled Pallas normalize+PReLU apply.
# ----------------------------------------------------------------------------
def _norm_prelu_kernel(alpha_ref, scale_ref, shift_ref, x_ref, o_ref):
    x = x_ref[0].astype(jnp.float32)                 # (ts, tc)
    y = x * scale_ref[0] + shift_ref[0]
    a = alpha_ref[0]
    o_ref[0] = jnp.where(y >= 0.0, y, a * y).astype(o_ref.dtype)


def instnorm_prelu(x, alpha):
    """x: (N, D, H, W, C) bf16; alpha: (1,) shared PReLU slope."""
    N, D, H, W, C = x.shape
    S = D * H * W
    xr = x.reshape(N, S, C)

    x32 = xr.astype(jnp.float32)
    mean = jnp.mean(x32, axis=1, keepdims=True)                      # (N,1,C)
    var = jnp.mean(jnp.square(x32), axis=1, keepdims=True) - jnp.square(mean)
    rstd = jax.lax.rsqrt(jnp.maximum(var, 0.0) + 1e-5)
    scale = rstd
    shift = -mean * rstd

    ts = min(2048, _round_up(S, 8))
    Sp = _round_up(S, ts)
    if Sp > S:
        xr = jnp.pad(xr, ((0, 0), (0, Sp - S), (0, 0)))
    tc = C if C <= 128 else 128

    out = pl.pallas_call(
        _norm_prelu_kernel,
        out_shape=jax.ShapeDtypeStruct((N, Sp, C), x.dtype),
        grid=(N, Sp // ts, C // tc),
        in_specs=[pl.BlockSpec(memory_space=pltpu.MemorySpace.SMEM),
                  pl.BlockSpec((1, 1, tc), lambda n, si, ci: (n, 0, ci)),
                  pl.BlockSpec((1, 1, tc), lambda n, si, ci: (n, 0, ci)),
                  pl.BlockSpec((1, ts, tc), lambda n, si, ci: (n, si, ci))],
        out_specs=pl.BlockSpec((1, ts, tc), lambda n, si, ci: (n, si, ci)),
        compiler_params=pltpu.CompilerParams(
            dimension_semantics=("parallel", "parallel", "parallel"),
            vmem_limit_bytes=_VMEM_LIMIT),
    )(alpha.astype(jnp.float32), scale, shift, xr)
    return out[:, :S, :].reshape(N, D, H, W, C)


# ----------------------------------------------------------------------------
# Pallas kernel 4: ReverseAttention elementwise  x * -sigmoid(y) + x
# ----------------------------------------------------------------------------
def _ra_kernel(x_ref, y_ref, o_ref):
    xv = x_ref[...].astype(jnp.float32)
    yv = y_ref[...].astype(jnp.float32)
    o_ref[...] = (xv * (1.0 - jax.nn.sigmoid(yv))).astype(o_ref.dtype)


def reverse_attention_elemwise(x, y):
    N, D, H, W, C = x.shape
    R = N * D * H * W
    tr = min(2048, _round_up(R, 8))
    Rp = _round_up(R, tr)
    xf = x.reshape(R, C)
    yf = y.reshape(R, C)
    if Rp > R:
        xf = jnp.pad(xf, ((0, Rp - R), (0, 0)))
        yf = jnp.pad(yf, ((0, Rp - R), (0, 0)))
    out = pl.pallas_call(
        _ra_kernel,
        out_shape=jax.ShapeDtypeStruct((Rp, C), x.dtype),
        grid=(Rp // tr,),
        in_specs=[pl.BlockSpec((tr, C), lambda i: (i, 0)),
                  pl.BlockSpec((tr, C), lambda i: (i, 0))],
        out_specs=pl.BlockSpec((tr, C), lambda i: (i, 0)),
        compiler_params=pltpu.CompilerParams(
            dimension_semantics=("parallel",),
            vmem_limit_bytes=_VMEM_LIMIT),
    )(xf, yf)
    return out[:R].reshape(N, D, H, W, C)


# ----------------------------------------------------------------------------
# Trilinear interpolation, align_corners=True (XLA glue; channels-last)
# ----------------------------------------------------------------------------
def _interp_axis(x, axis, out_len):
    in_len = x.shape[axis]
    if out_len == in_len:
        return x
    if out_len == 1:
        pos = jnp.zeros((1,), jnp.float32)
    else:
        pos = jnp.arange(out_len, dtype=jnp.float32) * ((in_len - 1) / (out_len - 1))
    lo = jnp.floor(pos).astype(jnp.int32)
    hi = jnp.minimum(lo + 1, in_len - 1)
    t = pos - lo.astype(jnp.float32)
    shape = [1] * x.ndim
    shape[axis] = out_len
    t = t.reshape(shape)
    xlo = jnp.take(x, lo, axis=axis)
    xhi = jnp.take(x, hi, axis=axis)
    return xlo * (1.0 - t) + xhi * t


def interpolate_trilinear(x, size):
    dtype = x.dtype
    Do, Ho, Wo = size
    y = _interp_axis(x, 1, Do)
    y = _interp_axis(y, 2, Ho)
    y = _interp_axis(y, 3, Wo)
    return y.astype(dtype)


# ----------------------------------------------------------------------------
# Module forwards (channels-last bf16 activations)
# ----------------------------------------------------------------------------
def _w_conv(w_pt):
    # PyTorch Conv3d weight (Cout, Cin, kd, kh, kw) -> (kd, kh, kw, Cin, Cout)
    return jnp.transpose(w_pt, (2, 3, 4, 1, 0))


def convolution_fwd(p, x, stride, padding, transpose=False):
    if transpose:
        y = conv_transpose3d_s2(x, p['conv']['w'], p['conv']['b'])
    else:
        y = conv3d(x, _w_conv(p['conv']['w']), p['conv']['b'],
                   stride=stride, padding=padding)
    return instnorm_prelu(y, p['alpha'])       # Dropout(p=0.0) is identity


def residual_fwd(p, x, stride):
    h = convolution_fwd(p['conv1'], x, stride, 1)
    h = convolution_fwd(p['conv2'], h, 1, 1)
    res = conv3d(x, _w_conv(p['res']['w']), p['res']['b'],
                 stride=stride, padding=1)
    return h + res


def cbam_fwd(p, x):
    pooled = jnp.mean(x.astype(jnp.float32), axis=(1, 2, 3))        # (N, C)
    h = jnp.maximum(pooled @ p['ca_w1'].T + p['ca_b1'], 0.0)        # tiny: XLA
    ca = jax.nn.sigmoid(h @ p['ca_w2'].T + p['ca_b2'])              # (N, C)
    x = x * ca[:, None, None, None, :].astype(x.dtype)
    mx = jnp.max(x, axis=-1, keepdims=True)
    av = jnp.mean(x.astype(jnp.float32), axis=-1, keepdims=True).astype(x.dtype)
    sa_in = jnp.concatenate([mx, av], axis=-1)                      # (N,D,H,W,2)
    sa_logit = conv3d(sa_in, _w_conv(p['sa']['w']), p['sa']['b'],
                      stride=1, padding=3)
    sa = jax.nn.sigmoid(sa_logit.astype(jnp.float32)).astype(x.dtype)
    return x * sa


def reverse_attention_fwd(p, x, y):
    y = interpolate_trilinear(y, x.shape[1:4])
    y = conv3d(y, _w_conv(p['w']), p['b'], stride=1, padding=0)
    return reverse_attention_elemwise(x, y)


def unet3d_forward(P, x_ncdhw):
    x = jnp.transpose(x_ncdhw, (0, 2, 3, 4, 1)).astype(jnp.bfloat16)   # NDHWC

    e1 = cbam_fwd(P['cbam1'], residual_fwd(P['enc1'], x, 2))
    e2 = cbam_fwd(P['cbam2'], residual_fwd(P['enc2'], e1, 2))
    e3 = cbam_fwd(P['cbam3'], residual_fwd(P['enc3'], e2, 2))
    e4 = cbam_fwd(P['cbam4'], residual_fwd(P['enc4'], e3, 2))
    b = cbam_fwd(P['cbam_b'], residual_fwd(P['bottleneck'], e4, 1))

    d1 = residual_fwd(
        P['dec1'],
        convolution_fwd(P['upconv1'], jnp.concatenate([b, e4], axis=-1),
                        2, 1, transpose=True), 1)
    d1_up = interpolate_trilinear(d1, e3.shape[1:4])

    d2 = residual_fwd(
        P['dec2'],
        convolution_fwd(P['upconv2'], jnp.concatenate([d1_up, e3], axis=-1),
                        2, 1, transpose=True), 1)
    ra2 = reverse_attention_fwd(P['ra2'], d2, d1_up)
    d2_up = interpolate_trilinear(ra2, e2.shape[1:4])

    d3 = residual_fwd(
        P['dec3'],
        convolution_fwd(P['upconv3'], jnp.concatenate([d2_up, e2], axis=-1),
                        2, 1, transpose=True), 1)
    ra3 = reverse_attention_fwd(P['ra3'], d3, d2_up)
    d3_up = interpolate_trilinear(ra3, e1.shape[1:4])

    d4 = residual_fwd(
        P['dec4'],
        convolution_fwd(P['upconv4'], jnp.concatenate([d3_up, e1], axis=-1),
                        2, 1, transpose=True), 1)
    ra4 = reverse_attention_fwd(P['ra4'], d4, d3_up)

    ra2_out = interpolate_trilinear(residual_fwd(P['dec_ra2'], ra2, 1),
                                    d4.shape[1:4])
    ra3_out = interpolate_trilinear(residual_fwd(P['dec_ra3'], ra3, 1),
                                    d4.shape[1:4])

    def to_ncdhw(t):
        return jnp.transpose(t, (0, 4, 1, 2, 3)).astype(jnp.float32)

    return to_ncdhw(d4), to_ncdhw(ra2_out), to_ncdhw(ra3_out), to_ncdhw(ra4)


# ----------------------------------------------------------------------------
# Deterministic parameter initialization (synthetic weights, PyTorch layouts)
# ----------------------------------------------------------------------------
class KeyGen:
    def __init__(self, key):
        self.key = key

    def __call__(self):
        self.key, sub = jax.random.split(self.key)
        return sub


def init_conv(kg, cin, cout, k):
    fan = cin * k ** 3
    return {'w': jax.random.normal(kg(), (cout, cin, k, k, k), jnp.float32)
                  / jnp.sqrt(float(fan)),
            'b': 0.01 * jax.random.normal(kg(), (cout,), jnp.float32)}


def init_convT(kg, cin, cout, k):
    fan = cin * k ** 3
    return {'w': jax.random.normal(kg(), (cin, cout, k, k, k), jnp.float32)
                  / jnp.sqrt(float(fan)),
            'b': 0.01 * jax.random.normal(kg(), (cout,), jnp.float32)}


def init_convolution(kg, cin, cout, k, transpose=False):
    conv = init_convT(kg, cin, cout, k) if transpose else init_conv(kg, cin, cout, k)
    return {'conv': conv, 'alpha': jnp.full((1,), 0.25, jnp.float32)}


def init_residual(kg, cin, cout):
    return {'conv1': init_convolution(kg, cin, cout, 3),
            'conv2': init_convolution(kg, cout, cout, 3),
            'res': init_conv(kg, cin, cout, 3)}


def init_cbam(kg, c, r=16):
    cr = c // r
    return {'ca_w1': jax.random.normal(kg(), (cr, c), jnp.float32) / jnp.sqrt(float(c)),
            'ca_b1': 0.01 * jax.random.normal(kg(), (cr,), jnp.float32),
            'ca_w2': jax.random.normal(kg(), (c, cr), jnp.float32) / jnp.sqrt(float(cr)),
            'ca_b2': 0.01 * jax.random.normal(kg(), (c,), jnp.float32),
            'sa': init_conv(kg, 2, 1, 7)}


def init_unet3d(kg, in_channels=2, channels=(64, 128, 256, 256, 512), num_classes=2):
    P = {}
    P['enc1'] = init_residual(kg, in_channels, channels[0])
    P['enc2'] = init_residual(kg, channels[0], channels[1])
    P['enc3'] = init_residual(kg, channels[1], channels[2])
    P['enc4'] = init_residual(kg, channels[2], channels[3])
    P['bottleneck'] = init_residual(kg, channels[3], channels[4])
    P['cbam1'] = init_cbam(kg, channels[0])
    P['cbam2'] = init_cbam(kg, channels[1])
    P['cbam3'] = init_cbam(kg, channels[2])
    P['cbam4'] = init_cbam(kg, channels[3])
    P['cbam_b'] = init_cbam(kg, channels[4])
    P['upconv1'] = init_convolution(kg, channels[4] + channels[3], channels[3], 3, transpose=True)
    P['dec1'] = init_residual(kg, channels[3], channels[3])
    P['upconv2'] = init_convolution(kg, channels[3] + channels[2], channels[2], 3, transpose=True)
    P['dec2'] = init_residual(kg, channels[2], channels[2])
    P['upconv3'] = init_convolution(kg, channels[2] + channels[1], channels[1], 3, transpose=True)
    P['dec3'] = init_residual(kg, channels[1], channels[1])
    P['upconv4'] = init_convolution(kg, channels[1] + channels[0], num_classes, 3, transpose=True)
    P['dec4'] = init_residual(kg, num_classes, num_classes)
    # ReverseAttention convs (same hard-coded out-channels as the PyTorch code)
    P['ra2'] = init_conv(kg, channels[2], 256, 1)
    P['dec_ra2'] = init_residual(kg, channels[2], num_classes)
    P['ra3'] = init_conv(kg, channels[2], 128, 1)
    P['dec_ra3'] = init_residual(kg, channels[1], num_classes)
    P['ra4'] = init_conv(kg, channels[1], num_classes, 1)
    # NOTE: decoder_reverse_attention4 exists in __init__ but is unused in forward.
    return P


# ----------------------------------------------------------------------------
if __name__ == "__main__":
    key = jax.random.PRNGKey(0)
    # NCDHW, 2 input channels, spatial 16 (divisible by 2^4 for the encoders).
    x = jax.random.normal(key, (1, 2, 16, 16, 16), jnp.float32)

    params = init_unet3d(KeyGen(jax.random.PRNGKey(0)))

    d4, ra2, ra3, ra4 = unet3d_forward(params, x)
    (d4, ra2, ra3, ra4) = jax.block_until_ready((d4, ra2, ra3, ra4))

    assert d4.shape == (1, 2, 16, 16, 16), d4.shape
    assert ra2.shape == (1, 2, 16, 16, 16), ra2.shape
    assert ra3.shape == (1, 2, 16, 16, 16), ra3.shape
    assert ra4.shape == (1, 2, 16, 16, 16), ra4.shape
    for t in (d4, ra2, ra3, ra4):
        assert bool(jnp.all(jnp.isfinite(t)))

    print("KERNEL_OK")
</pallas_src>

<mosaic_0001>
module attributes {stable_mosaic.version = 11 : i64} {
  func.func @_gemm_bias_kernel(%arg0: i32, %arg1: i32, %arg2: i32, %arg3: memref<512x54xbf16, #tpu.memory_space<vmem>>, %arg4: memref<54x128xbf16, #tpu.memory_space<vmem>>, %arg5: memref<1x128xf32, #tpu.memory_space<vmem>>, %arg6: memref<512x128xbf16, #tpu.memory_space<vmem>>, %arg7: memref<512x128xf32, #tpu.memory_space<vmem>>) attributes {dimension_semantics = [#tpu.dimension_semantics<parallel>, #tpu.dimension_semantics<parallel>, #tpu.dimension_semantics<arbitrary>], iteration_bounds = array<i64: 1, 1, 1>, scalar_prefetch = 0 : i64, scratch_operands = 1 : i64, tpu.core_type = #tpu.core_type<tc>, window_params = [{transform_indices = @transform_0, window_bounds = array<i64: 512, 54>}, {transform_indices = @transform_1, window_bounds = array<i64: 54, 128>}, {transform_indices = @transform_2, window_bounds = array<i64: 1, 128>}, {transform_indices = @transform_3, window_bounds = array<i64: 512, 128>}]} {
    %c0_i32 = arith.constant 0 : i32
    %0 = arith.cmpi eq, %arg2, %c0_i32 : i32
    %1 = arith.extui %0 : i1 to i32
    %c0_i32_0 = arith.constant 0 : i32
    %2 = arith.cmpi ne, %1, %c0_i32_0 : i32
    scf.if %2 {
      %cst_10 = arith.constant 0.000000e+00 : f32
      %12 = vector.broadcast %cst_10 : f32 to vector<512x128xf32>
      %c0_11 = arith.constant 0 : index
      %c0_12 = arith.constant 0 : index
      %13 = vector.load %arg7[%c0_11, %c0_12] : memref<512x128xf32, #tpu.memory_space<vmem>>, vector<512x128xf32>
      tpu.vector_store %arg7[%c0_11, %c0_12], %12 {strides = array<i32>} : memref<512x128xf32, #tpu.memory_space<vmem>>, vector<512x128xf32>,
    } else {
    }
    %c0 = arith.constant 0 : index
    %c0_1 = arith.constant 0 : index
    %3 = vector.load %arg7[%c0, %c0_1] : memref<512x128xf32, #tpu.memory_space<vmem>>, vector<512x128xf32>
    %c0_2 = arith.constant 0 : index
    %c0_3 = arith.constant 0 : index
    %4 = vector.load %arg3[%c0_2, %c0_3] : memref<512x54xbf16, #tpu.memory_space<vmem>>, vector<512x54xbf16>
    %c0_4 = arith.constant 0 : index
    %c0_5 = arith.constant 0 : index
    %5 = vector.load %arg4[%c0_4, %c0_5] : memref<54x128xbf16, #tpu.memory_space<vmem>>, vector<54x128xbf16>
    %cst = arith.constant dense<0.000000e+00> : vector<512x128xf32>
    %6 = tpu.matmul %4, %5, %cst {dimension_numbers = #tpu.dot_dimension_numbers<[1], [0], [0], [1], [0, 0, 1, 1], [], []>} : vector<512x54xbf16>, vector<54x128xbf16>, vector<512x128xf32> -> vector<512x128xf32>
    %7 = arith.addf %3, %6 : vector<512x128xf32>
    %c0_6 = arith.constant 0 : index
    %c0_7 = arith.constant 0 : index
    %8 = vector.load %arg7[%c0_6, %c0_7] : memref<512x128xf32, #tpu.memory_space<vmem>>, vector<512x128xf32>
    tpu.vector_store %arg7[%c0_6, %c0_7], %7 {strides = array<i32>} : memref<512x128xf32, #tpu.memory_space<vmem>>, vector<512x128xf32>,
    %c0_i32_8 = arith.constant 0 : i32
    %9 = arith.cmpi eq, %arg2, %c0_i32_8 : i32
    %10 = arith.extui %9 : i1 to i32
    %c0_i32_9 = arith.constant 0 : i32
    %11 = arith.cmpi ne, %10, %c0_i32_9 : i32
    scf.if %11 {
      %c0_10 = arith.constant 0 : index
      %c0_11 = arith.constant 0 : index
      %12 = vector.load %arg7[%c0_10, %c0_11] : memref<512x128xf32, #tpu.memory_space<vmem>>, vector<512x128xf32>
      %c0_12 = arith.constant 0 : index
      %c0_13 = arith.constant 0 : index
      %13 = vector.load %arg5[%c0_12, %c0_13] : memref<1x128xf32, #tpu.memory_space<vmem>>, vector<1x128xf32>
      %14 = vector.broadcast %13 : vector<1x128xf32> to vector<512x128xf32>
      %15 = arith.addf %12, %14 : vector<512x128xf32>
      %16 = arith.truncf %15 : vector<512x128xf32> to vector<512x128xbf16>
      %c0_14 = arith.constant 0 : index
      %c0_15 = arith.constant 0 : index
      %17 = vector.load %arg6[%c0_14, %c0_15] : memref<512x128xbf16, #tpu.memory_space<vmem>>, vector<512x128xbf16>
      tpu.vector_store %arg6[%c0_14, %c0_15], %16 {strides = array<i32>} : memref<512x128xbf16, #tpu.memory_space<vmem>>, vector<512x128xbf16>,
    } else {
    }
    return
  }
  func.func @transform_0(%arg0: i32, %arg1: i32, %arg2: i32) -> (i32, i32) {
    %c0_i32 = arith.constant 0 : i32
    return %arg0, %arg2 : i32, i32
  }
  func.func @transform_1(%arg0: i32, %arg1: i32, %arg2: i32) -> (i32, i32) {
    %c0_i32 = arith.constant 0 : i32
    return %arg2, %arg1 : i32, i32
  }
  func.func @transform_2(%arg0: i32, %arg1: i32, %arg2: i32) -> (i32, i32) {
    %c0_i32 = arith.constant 0 : i32
    %c0_i32_0 = arith.constant 0 : i32
    return %c0_i32, %arg1 : i32, i32
  }
  func.func @transform_3(%arg0: i32, %arg1: i32, %arg2: i32) -> (i32, i32) {
    %c0_i32 = arith.constant 0 : i32
    return %arg0, %arg1 : i32, i32
  }
}

</mosaic_0001>

<llo_original>
// kernel: tpu_custom_call.1
$region0: #{tpu_custom_call.1}
  #allocation0 [shape = 'u32[]', space=smem, size = 0x4, offset = 0x4, fixed_abs, tag = 'smem constant byte address 0x4 - core index']
  #allocation1 [shape = 'u32[144,128]{1,0:T(1,128)}', space=vmem, size = 0x12000, scoped, tag = 'internal scratch']
  #allocation2 [shape = 'f32[512,128]{1,0:T(8,128)}', space=vmem, size = 0x40000, scoped, tag = 'scratch operand']
  %s0 = inlined_call_operand.vmem [shape: bf16[512,54], index: 0, kind: input, shape index: {}]
  %s1 = inlined_call_operand.vmem [shape: bf16[54,128], index: 1, kind: input, shape index: {}]
  %s2 = inlined_call_operand.vmem [shape: f32[1,128], index: 2, kind: input, shape index: {}]
  %s3 = inlined_call_operand.hbm [shape: bf16[512,128], index: 3, kind: output, shape index: {}]
  %s4 = sld [smem:[#allocation0]]
  $region30: #{tpu_custom_call.1} parent=0
    _
  %s6 = ssub.s32 1, %s4
  %s7 = scalar_select 0, %s6, %s4
  $region1: #{tpu_custom_call.1} parent=0
    #allocation3 [shape = 'u8[131072]{0}', space=vmem, size = 0x20000, scoped, tag = 'output window, operand 0, single buffered']
    #allocation4 [shape = 's32[1]{0}', space=sflag, size = 0x4, scoped, tag = 'scoped memory for tpu_custom_call.1']
    %8 = vsyncpa [#allocation4], 0
    // Predicated region
    $region2: #{tpu_custom_call.1} parent=1 // pred_check
      _
    $region3: #{tpu_custom_call.1} parent=1 // pred_check_branch
      %10 = sbr.rel (0) target = $region5
    $region4: #{tpu_custom_call.1} parent=1 // pred_region
      _
    $region5: #{tpu_custom_call.1} parent=1 // pred_fallthru
      _
    // Predicated region
    $region6: #{tpu_custom_call.1} parent=1 // pred_check
      _
    $region7: #{tpu_custom_call.1} parent=1 // pred_check_branch
      %12 = sbr.rel (0) target = $region9
    $region8: #{tpu_custom_call.1} parent=1 // pred_region
      _
    $region9: #{tpu_custom_call.1} parent=1 // pred_fallthru
      _
    // Predicated region
    $region10: #{tpu_custom_call.1} parent=1 // pred_check
      _
    $region11: #{tpu_custom_call.1} parent=1 // pred_check_branch
      %14 = sbr.rel (0) target = $region13
    $region12: #{tpu_custom_call.1} parent=1 // pred_region
      _
    $region13: #{tpu_custom_call.1} parent=1 // pred_fallthru
      _
    %p16 = scmp.eq.s32.totalorder 0, 0
    // Predicated region
    $region14: #{tpu_custom_call.1} parent=1 // pred_check
      %p17 = pneg %p16
    $region15: #{tpu_custom_call.1} parent=1 // pred_check_branch
      %19 = sbr.rel (%p17) target = $region17
    $region16: #{tpu_custom_call.1} parent=1 // pred_region
      %20 = vst [vmem:[#allocation2] sm:$0xff] 0.0
      %21 = vst [vmem:[#allocation2 + $0x8] sm:$0xff] 0.0
      %22 = vst [vmem:[#allocation2 + $0x10] sm:$0xff] 0.0
      %23 = vst [vmem:[#allocation2 + $0x18] sm:$0xff] 0.0
      %24 = vst [vmem:[#allocation2 + $0x20] sm:$0xff] 0.0
      %25 = vst [vmem:[#allocation2 + $0x28] sm:$0xff] 0.0
      %26 = vst [vmem:[#allocation2 + $0x30] sm:$0xff] 0.0
      %27 = vst [vmem:[#allocation2 + $0x38] sm:$0xff] 0.0
      %28 = vst [vmem:[#allocation2 + $0x40] sm:$0xff] 0.0
      %29 = vst [vmem:[#allocation2 + $0x48] sm:$0xff] 0.0
      %30 = vst [vmem:[#allocation2 + $0x50] sm:$0xff] 0.0
      %31 = vst [vmem:[#allocation2 + $0x58] sm:$0xff] 0.0
      %32 = vst [vmem:[#allocation2 + $0x60] sm:$0xff] 0.0
      %33 = vst [vmem:[#allocation2 + $0x68] sm:$0xff] 0.0
      %34 = vst [vmem:[#allocation2 + $0x70] sm:$0xff] 0.0
      %35 = vst [vmem:[#allocation2 + $0x78] sm:$0xff] 0.0
      %36 = vst [vmem:[#allocation2 + $0x80] sm:$0xff] 0.0
      %37 = vst [vmem:[#allocation2 + $0x88] sm:$0xff] 0.0
      %38 = vst [vmem:[#allocation2 + $0x90] sm:$0xff] 0.0
      %39 = vst [vmem:[#allocation2 + $0x98] sm:$0xff] 0.0
      %40 = vst [vmem:[#allocation2 + $0xa0] sm:$0xff] 0.0
      %41 = vst [vmem:[#allocation2 + $0xa8] sm:$0xff] 0.0
      %42 = vst [vmem:[#allocation2 + $0xb0] sm:$0xff] 0.0
      %43 = vst [vmem:[#allocation2 + $0xb8] sm:$0xff] 0.0
      %44 = vst [vmem:[#allocation2 + $0xc0] sm:$0xff] 0.0
      %45 = vst [vmem:[#allocation2 + $0xc8] sm:$0xff] 0.0
      %46 = vst [vmem:[#allocation2 + $0xd0] sm:$0xff] 0.0
      %47 = vst [vmem:[#allocation2 + $0xd8] sm:$0xff] 0.0
      %48 = vst [vmem:[#allocation2 + $0xe0] sm:$0xff] 0.0
      %49 = vst [vmem:[#allocation2 + $0xe8] sm:$0xff] 0.0
      %50 = vst [vmem:[#allocation2 + $0xf0] sm:$0xff] 0.0
      %51 = vst [vmem:[#allocation2 + $0xf8] sm:$0xff] 0.0
      %52 = vst [vmem:[#allocation2 + $0x100] sm:$0xff] 0.0
      %53 = vst [vmem:[#allocation2 + $0x108] sm:$0xff] 0.0
      %54 = vst [vmem:[#allocation2 + $0x110] sm:$0xff] 0.0
      %55 = vst [vmem:[#allocation2 + $0x118] sm:$0xff] 0.0
      %56 = vst [vmem:[#allocation2 + $0x120] sm:$0xff] 0.0
      %57 = vst [vmem:[#allocation2 + $0x128] sm:$0xff] 0.0
      %58 = vst [vmem:[#allocation2 + $0x130] sm:$0xff] 0.0
      %59 = vst [vmem:[#allocation2 + $0x138] sm:$0xff] 0.0
      %60 = vst [vmem:[#allocation2 + $0x140] sm:$0xff] 0.0
      %61 = vst [vmem:[#allocation2 + $0x148] sm:$0xff] 0.0
      %62 = vst [vmem:[#allocation2 + $0x150] sm:$0xff] 0.0
      %63 = vst [vmem:[#allocation2 + $0x158] sm:$0xff] 0.0
      %64 = vst [vmem:[#allocation2 + $0x160] sm:$0xff] 0.0
      %65 = vst [vmem:[#allocation2 + $0x168] sm:$0xff] 0.0
      %66 = vst [vmem:[#allocation2 + $0x170] sm:$0xff] 0.0
      %67 = vst [vmem:[#allocation2 + $0x178] sm:$0xff] 0.0
      %68 = vst [vmem:[#allocation2 + $0x180] sm:$0xff] 0.0
      %69 = vst [vmem:[#allocation2 + $0x188] sm:$0xff] 0.0
      %70 = vst [vmem:[#allocation2 + $0x190] sm:$0xff] 0.0
      %71 = vst [vmem:[#allocation2 + $0x198] sm:$0xff] 0.0
      %72 = vst [vmem:[#allocation2 + $0x1a0] sm:$0xff] 0.0
      %73 = vst [vmem:[#allocation2 + $0x1a8] sm:$0xff] 0.0
      %74 = vst [vmem:[#allocation2 + $0x1b0] sm:$0xff] 0.0
      %75 = vst [vmem:[#allocation2 + $0x1b8] sm:$0xff] 0.0
      %76 = vst [vmem:[#allocation2 + $0x1c0] sm:$0xff] 0.0
      %77 = vst [vmem:[#allocation2 + $0x1c8] sm:$0xff] 0.0
      %78 = vst [vmem:[#allocation2 + $0x1d0] sm:$0xff] 0.0
      %79 = vst [vmem:[#allocation2 + $0x1d8] sm:$0xff] 0.0
      %80 = vst [vmem:[#allocation2 + $0x1e0] sm:$0xff] 0.0
      %81 = vst [vmem:[#allocation2 + $0x1e8] sm:$0xff] 0.0
      %82 = vst [vmem:[#allocation2 + $0x1f0] sm:$0xff] 0.0
      %83 = vst [vmem:[#allocation2 + $0x1f8] sm:$0xff] 0.0
    $region17: #{tpu_custom_call.1} parent=1 // pred_fallthru
      _
    %v84 = vld [vmem:[#allocation2] sm:$0xff]
    %v85 = vld [vmem:[#allocation2 + $0x8] sm:$0xff]
    %v86 = vld [vmem:[#allocation2 + $0x10] sm:$0xff]
    %v87 = vld [vmem:[#allocation2 + $0x18] sm:$0xff]
    %v88 = vld [vmem:[#allocation2 + $0x20] sm:$0xff]
    %v89 = vld [vmem:[#allocation2 + $0x28] sm:$0xff]
    %v90 = vld [vmem:[#allocation2 + $0x30] sm:$0xff]
    %v91 = vld [vmem:[#allocation2 + $0x38] sm:$0xff]
    %v92 = vld [vmem:[#allocation2 + $0x40] sm:$0xff]
    %v93 = vld [vmem:[#allocation2 + $0x48] sm:$0xff]
    %v94 = vld [vmem:[#allocation2 + $0x50] sm:$0xff]
    %v95 = vld [vmem:[#allocation2 + $0x58] sm:$0xff]
    %v96 = vld [vmem:[#allocation2 + $0x60] sm:$0xff]
    %v97 = vld [vmem:[#allocation2 + $0x68] sm:$0xff]
    %v98 = vld [vmem:[#allocation2 + $0x70] sm:$0xff]
    %v99 = vld [vmem:[#allocation2 + $0x78] sm:$0xff]
    %v100 = vld [vmem:[#allocation2 + $0x80] sm:$0xff]
    %v101 = vld [vmem:[#allocation2 + $0x88] sm:$0xff]
    %v102 = vld [vmem:[#allocation2 + $0x90] sm:$0xff]
    %v103 = vld [vmem:[#allocation2 + $0x98] sm:$0xff]
    %v104 = vld [vmem:[#allocation2 + $0xa0] sm:$0xff]
    %v105 = vld [vmem:[#allocation2 + $0xa8] sm:$0xff]
    %v106 = vld [vmem:[#allocation2 + $0xb0] sm:$0xff]
    %v107 = vld [vmem:[#allocation2 + $0xb8] sm:$0xff]
    %v108 = vld [vmem:[#allocation2 + $0xc0] sm:$0xff]
    %v109 = vld [vmem:[#allocation2 + $0xc8] sm:$0xff]
    %v110 = vld [vmem:[#allocation2 + $0xd0] sm:$0xff]
    %v111 = vld [vmem:[#allocation2 + $0xd8] sm:$0xff]
    %v112 = vld [vmem:[#allocation2 + $0xe0] sm:$0xff]
    %v113 = vld [vmem:[#allocation2 + $0xe8] sm:$0xff]
    %v114 = vld [vmem:[#allocation2 + $0xf0] sm:$0xff]
    %v115 = vld [vmem:[#allocation2 + $0xf8] sm:$0xff]
    %v116 = vld [vmem:[#allocation2 + $0x100] sm:$0xff]
    %v117 = vld [vmem:[#allocation2 + $0x108] sm:$0xff]
    %v118 = vld [vmem:[#allocation2 + $0x110] sm:$0xff]
    %v119 = vld [vmem:[#allocation2 + $0x118] sm:$0xff]
    %v120 = vld [vmem:[#allocation2 + $0x120] sm:$0xff]
    %v121 = vld [vmem:[#allocation2 + $0x128] sm:$0xff]
    %v122 = vld [vmem:[#allocation2 + $0x130] sm:$0xff]
    %v123 = vld [vmem:[#allocation2 + $0x138] sm:$0xff]
    %v124 = vld [vmem:[#allocation2 + $0x140] sm:$0xff]
    %v125 = vld [vmem:[#allocation2 + $0x148] sm:$0xff]
    %v126 = vld [vmem:[#allocation2 + $0x150] sm:$0xff]
    %v127 = vld [vmem:[#allocation2 + $0x158] sm:$0xff]
    %v128 = vld [vmem:[#allocation2 + $0x160] sm:$0xff]
    %v129 = vld [vmem:[#allocation2 + $0x168] sm:$0xff]
    %v130 = vld [vmem:[#allocation2 + $0x170] sm:$0xff]
    %v131 = vld [vmem:[#allocation2 + $0x178] sm:$0xff]
    %v132 = vld [vmem:[#allocation2 + $0x180] sm:$0xff]
    %v133 = vld [vmem:[#allocation2 + $0x188] sm:$0xff]
    %v134 = vld [vmem:[#allocation2 + $0x190] sm:$0xff]
    %v135 = vld [vmem:[#allocation2 + $0x198] sm:$0xff]
    %v136 = vld [vmem:[#allocation2 + $0x1a0] sm:$0xff]
    %v137 = vld [vmem:[#allocation2 + $0x1a8] sm:$0xff]
    %v138 = vld [vmem:[#allocation2 + $0x1b0] sm:$0xff]
    %v139 = vld [vmem:[#allocation2 + $0x1b8] sm:$0xff]
    %v140 = vld [vmem:[#allocation2 + $0x1c0] sm:$0xff]
    %v141 = vld [vmem:[#allocation2 + $0x1c8] sm:$0xff]
    %v142 = vld [vmem:[#allocation2 + $0x1d0] sm:$0xff]
    %v143 = vld [vmem:[#allocation2 + $0x1d8] sm:$0xff]
    %v144 = vld [vmem:[#allocation2 + $0x1e0] sm:$0xff]
    %v145 = vld [vmem:[#allocation2 + $0x1e8] sm:$0xff]
    %v146 = vld [vmem:[#allocation2 + $0x1f0] sm:$0xff]
    %v147 = vld [vmem:[#allocation2 + $0x1f8] sm:$0xff]
    %v148 = vld [vmem:[%s0] sm:$0xf]
    %v149 = vld [vmem:[%s0 + $0x4] sm:$0xf]
    %v150 = vld [vmem:[%s0 + $0x8] sm:$0xf]
    %v151 = vld [vmem:[%s0 + $0xc] sm:$0xf]
    %v152 = vld [vmem:[%s0 + $0x10] sm:$0xf]
    %v153 = vld [vmem:[%s0 + $0x14] sm:$0xf]
    %v154 = vld [vmem:[%s0 + $0x18] sm:$0xf]
    %v155 = vld [vmem:[%s0 + $0x1c] sm:$0xf]
    %v156 = vld [vmem:[%s0 + $0x20] sm:$0xf]
    %v157 = vld [vmem:[%s0 + $0x24] sm:$0xf]
    %v158 = vld [vmem:[%s0 + $0x28] sm:$0xf]
    %v159 = vld [vmem:[%s0 + $0x2c] sm:$0xf]
    %v160 = vld [vmem:[%s0 + $0x30] sm:$0xf]
    %v161 = vld [vmem:[%s0 + $0x34] sm:$0xf]
    %v162 = vld [vmem:[%s0 + $0x38] sm:$0xf]
    %v163 = vld [vmem:[%s0 + $0x3c] sm:$0xf]
    %v164 = vld [vmem:[%s0 + $0x40] sm:$0xf]
    %v165 = vld [vmem:[%s0 + $0x44] sm:$0xf]
    %v166 = vld [vmem:[%s0 + $0x48] sm:$0xf]
    %v167 = vld [vmem:[%s0 + $0x4c] sm:$0xf]
    %v168 = vld [vmem:[%s0 + $0x50] sm:$0xf]
    %v169 = vld [vmem:[%s0 + $0x54] sm:$0xf]
    %v170 = vld [vmem:[%s0 + $0x58] sm:$0xf]
    %v171 = vld [vmem:[%s0 + $0x5c] sm:$0xf]
    %v172 = vld [vmem:[%s0 + $0x60] sm:$0xf]
    %v173 = vld [vmem:[%s0 + $0x64] sm:$0xf]
    %v174 = vld [vmem:[%s0 + $0x68] sm:$0xf]
    %v175 = vld [vmem:[%s0 + $0x6c] sm:$0xf]
    %v176 = vld [vmem:[%s0 + $0x70] sm:$0xf]
    %v177 = vld [vmem:[%s0 + $0x74] sm:$0xf]
    %v178 = vld [vmem:[%s0 + $0x78] sm:$0xf]
    %v179 = vld [vmem:[%s0 + $0x7c] sm:$0xf]
    %v180 = vld [vmem:[%s0 + $0x80] sm:$0xf]
    %v181 = vld [vmem:[%s0 + $0x84] sm:$0xf]
    %v182 = vld [vmem:[%s0 + $0x88] sm:$0xf]
    %v183 = vld [vmem:[%s0 + $0x8c] sm:$0xf]
    %v184 = vld [vmem:[%s0 + $0x90] sm:$0xf]
    %v185 = vld [vmem:[%s0 + $0x94] sm:$0xf]
    %v186 = vld [vmem:[%s0 + $0x98] sm:$0xf]
    %v187 = vld [vmem:[%s0 + $0x9c] sm:$0xf]
    %v188 = vld [vmem:[%s0 + $0xa0] sm:$0xf]
    %v189 = vld [vmem:[%s0 + $0xa4] sm:$0xf]
    %v190 = vld [vmem:[%s0 + $0xa8] sm:$0xf]
    %v191 = vld [vmem:[%s0 + $0xac] sm:$0xf]
    %v192 = vld [vmem:[%s0 + $0xb0] sm:$0xf]
    %v193 = vld [vmem:[%s0 + $0xb4] sm:$0xf]
    %v194 = vld [vmem:[%s0 + $0xb8] sm:$0xf]
    %v195 = vld [vmem:[%s0 + $0xbc] sm:$0xf]
    %v196 = vld [vmem:[%s0 + $0xc0] sm:$0xf]
    %v197 = vld [vmem:[%s0 + $0xc4] sm:$0xf]
    %v198 = vld [vmem:[%s0 + $0xc8] sm:$0xf]
    %v199 = vld [vmem:[%s0 + $0xcc] sm:$0xf]
    %v200 = vld [vmem:[%s0 + $0xd0] sm:$0xf]
    %v201 = vld [vmem:[%s0 + $0xd4] sm:$0xf]
    %v202 = vld [vmem:[%s0 + $0xd8] sm:$0xf]
    %v203 = vld [vmem:[%s0 + $0xdc] sm:$0xf]
    %v204 = vld [vmem:[%s0 + $0xe0] sm:$0xf]
    %v205 = vld [vmem:[%s0 + $0xe4] sm:$0xf]
    %v206 = vld [vmem:[%s0 + $0xe8] sm:$0xf]
    %v207 = vld [vmem:[%s0 + $0xec] sm:$0xf]
    %v208 = vld [vmem:[%s0 + $0xf0] sm:$0xf]
    %v209 = vld [vmem:[%s0 + $0xf4] sm:$0xf]
    %v210 = vld [vmem:[%s0 + $0xf8] sm:$0xf]
    %v211 = vld [vmem:[%s0 + $0xfc] sm:$0xf]
    %v212 = vld [vmem:[%s1] sm:$0xf]
    %v213 = vld [vmem:[%s1 + $0x4] sm:$0xf]
    %v214 = vld [vmem:[%s1 + $0x8] sm:$0xf]
    %v215 = vld [vmem:[%s1 + $0xc] sm:$0xf]
    %v216 = vld [vmem:[%s1 + $0x10] sm:$0xf]
    %v217 = vld [vmem:[%s1 + $0x14] sm:$0xf]
    %v218 = vld [vmem:[%s1 + $0x18] sm:$0x7]
    %v283 = vunpack.c.l.b16 %v148
    %v284 = vunpack.c.l.b16 %v149
    %v285 = vunpack.c.l.b16 %v150
    %v286 = vunpack.c.l.b16 %v151
    %v287 = vunpack.c.l.b16 %v152
    %v288 = vunpack.c.l.b16 %v153
    %v289 = vunpack.c.l.b16 %v154
    %v290 = vunpack.c.l.b16 %v155
    %v291 = vunpack.c.l.b16 %v156
    %v292 = vunpack.c.l.b16 %v157
    %v293 = vunpack.c.l.b16 %v158
    %v294 = vunpack.c.l.b16 %v159
    %v295 = vunpack.c.l.b16 %v160
    %v296 = vunpack.c.l.b16 %v161
    %v297 = vunpack.c.l.b16 %v162
    %v298 = vunpack.c.l.b16 %v163
    %v299 = vunpack.c.l.b16 %v164
    %v300 = vunpack.c.l.b16 %v165
    %v301 = vunpack.c.l.b16 %v166
    %v302 = vunpack.c.l.b16 %v167
    %v303 = vunpack.c.l.b16 %v168
    %v304 = vunpack.c.l.b16 %v169
    %v305 = vunpack.c.l.b16 %v170
    %v306 = vunpack.c.l.b16 %v171
    %v307 = vunpack.c.l.b16 %v172
    %v308 = vunpack.c.l.b16 %v173
    %v309 = vunpack.c.l.b16 %v174
    %v310 = vunpack.c.l.b16 %v175
    %v311 = vunpack.c.l.b16 %v176
    %v312 = vunpack.c.l.b16 %v177
    %v313 = vunpack.c.l.b16 %v178
    %v314 = vunpack.c.l.b16 %v179
    %v315 = vunpack.c.l.b16 %v180
    %v316 = vunpack.c.l.b16 %v181
    %v317 = vunpack.c.l.b16 %v182
    %v318 = vunpack.c.l.b16 %v183
    %v319 = vunpack.c.l.b16 %v184
    %v320 = vunpack.c.l.b16 %v185
    %v321 = vunpack.c.l.b16 %v186
    %v322 = vunpack.c.l.b16 %v187
    %v323 = vunpack.c.l.b16 %v188
    %v324 = vunpack.c.l.b16 %v189
    %v325 = vunpack.c.l.b16 %v190
    %v326 = vunpack.c.l.b16 %v191
    %v327 = vunpack.c.l.b16 %v192
    %v328 = vunpack.c.l.b16 %v193
    %v329 = vunpack.c.l.b16 %v194
    %v330 = vunpack.c.l.b16 %v195
    %v331 = vunpack.c.l.b16 %v196
    %v332 = vunpack.c.l.b16 %v197
    %v333 = vunpack.c.l.b16 %v198
    %v334 = vunpack.c.l.b16 %v199
    %v335 = vunpack.c.l.b16 %v200
    %v336 = vunpack.c.l.b16 %v201
    %v337 = vunpack.c.l.b16 %v202
    %v338 = vunpack.c.l.b16 %v203
    %v339 = vunpack.c.l.b16 %v204
    %v340 = vunpack.c.l.b16 %v205
    %v341 = vunpack.c.l.b16 %v206
    %v342 = vunpack.c.l.b16 %v207
    %v343 = vunpack.c.l.b16 %v208
    %v344 = vunpack.c.l.b16 %v209
    %v345 = vunpack.c.l.b16 %v210
    %v346 = vunpack.c.l.b16 %v211
    %v347 = vpack.c.b16 %v284, %v283
    %v348 = vpack.c.b16 %v286, %v285
    %v349 = vpack.c.b16 %v288, %v287
    %v350 = vpack.c.b16 %v290, %v289
    %v351 = vpack.c.b16 %v292, %v291
    %v352 = vpack.c.b16 %v294, %v293
    %v353 = vpack.c.b16 %v296, %v295
    %v354 = vpack.c.b16 %v298, %v297
    %v355 = vpack.c.b16 %v300, %v299
    %v356 = vpack.c.b16 %v302, %v301
    %v357 = vpack.c.b16 %v304, %v303
    %v358 = vpack.c.b16 %v306, %v305
    %v359 = vpack.c.b16 %v308, %v307
    %v360 = vpack.c.b16 %v310, %v309
    %v361 = vpack.c.b16 %v312, %v311
    %v362 = vpack.c.b16 %v314, %v313
    %v363 = vpack.c.b16 %v316, %v315
    %v364 = vpack.c.b16 %v318, %v317
    %v365 = vpack.c.b16 %v320, %v319
    %v366 = vpack.c.b16 %v322, %v321
    %v367 = vpack.c.b16 %v324, %v323
    %v368 = vpack.c.b16 %v326, %v325
    %v369 = vpack.c.b16 %v328, %v327
    %v370 = vpack.c.b16 %v330, %v329
    %v371 = vpack.c.b16 %v332, %v331
    %v372 = vpack.c.b16 %v334, %v333
    %v373 = vpack.c.b16 %v336, %v335
    %v374 = vpack.c.b16 %v338, %v337
    %v375 = vpack.c.b16 %v340, %v339
    %v376 = vpack.c.b16 %v342, %v341
    %v377 = vpack.c.b16 %v344, %v343
    %v378 = vpack.c.b16 %v346, %v345
    %v386 = vunpack.c.l.b16 %v212
    %v387 = vunpack.c.l.b16 %v213
    %v388 = vunpack.c.l.b16 %v214
    %v389 = vunpack.c.l.b16 %v215
    %v390 = vunpack.c.l.b16 %v216
    %v391 = vunpack.c.l.b16 %v217
    %v392 = vunpack.c.l.b16 %v218
    %v393 = vpack.c.b16 %v387, %v386
    %v394 = vpack.c.b16 %v389, %v388
    %v395 = vpack.c.b16 %v391, %v390
    %v396 = vpack.c.b16 %v392, %v392
    %vm400 = vcmask 441344
    %v402 = vsel %vm400, %v347, 0
    %v405 = vsel %vm400, %v348, 0
    %v408 = vsel %vm400, %v349, 0
    %v411 = vsel %vm400, %v350, 0
    %v414 = vsel %vm400, %v351, 0
    %v417 = vsel %vm400, %v352, 0
    %v420 = vsel %vm400, %v353, 0
    %v423 = vsel %vm400, %v354, 0
    %v426 = vsel %vm400, %v355, 0
    %v429 = vsel %vm400, %v356, 0
    %v432 = vsel %vm400, %v357, 0
    %v435 = vsel %vm400, %v358, 0
    %v438 = vsel %vm400, %v359, 0
    %v441 = vsel %vm400, %v360, 0
    %v444 = vsel %vm400, %v361, 0
    %v447 = vsel %vm400, %v362, 0
    %v450 = vsel %vm400, %v363, 0
    %v453 = vsel %vm400, %v364, 0
    %v456 = vsel %vm400, %v365, 0
    %v459 = vsel %vm400, %v366, 0
    %v462 = vsel %vm400, %v367, 0
    %v465 = vsel %vm400, %v368, 0
    %v468 = vsel %vm400, %v369, 0
    %v471 = vsel %vm400, %v370, 0
    %v474 = vsel %vm400, %v371, 0
    %v477 = vsel %vm400, %v372, 0
    %v480 = vsel %vm400, %v373, 0
    %v483 = vsel %vm400, %v374, 0
    %v486 = vsel %vm400, %v375, 0
    %v489 = vsel %vm400, %v376, 0
    %v492 = vsel %vm400, %v377, 0
    %v495 = vsel %vm400, %v378, 0
    %vm497 = vcmask 1042432
    %v499 = vsel %vm497, %v396, 0
    %501 = vmatprep.subr.bf16.mxu0 0
    %502 = vmatpush1.bf16.msra.mxu0 %v393
    %503 = vmatprep.subr.bf16.mxu0 0
    %504 = vmatpush1.bf16.msra.mxu0 %v394
    %505 = vmatprep.subr.bf16.mxu0 0
    %506 = vmatpush1.bf16.msra.mxu0 %v395
    %507 = vmatprep.subr.bf16.mxu0 0
    %508 = vmatpush1.bf16.msra.mxu0 %v499
    %509 = vmatprep.subr.bf16.mxu0 0
    %510 = vmatpush1.bf16.msra.mxu0 0
    %511 = vmatprep.subr.bf16.mxu0 0
    %512 = vmatpush1.bf16.msra.mxu0 0
    %513 = vmatprep.subr.bf16.mxu0 0
    %514 = vmatpush1.bf16.msra.mxu0 0
    %515 = vmatprep.subr.bf16.mxu0 0
    %516 = vmatpush1.bf16.msra.mxu0 0
    %517 = vmatprep.subr.bf16.mxu0 0
    %518 = vmatpush1.bf16.msra.mxu0 0
    %519 = vmatprep.subr.bf16.mxu0 0
    %520 = vmatpush1.bf16.msra.mxu0 0
    %521 = vmatprep.subr.bf16.mxu0 0
    %522 = vmatpush1.bf16.msra.mxu0 0
    %523 = vmatprep.subr.bf16.mxu0 0
    %524 = vmatpush1.bf16.msra.mxu0 0
    %525 = vmatprep.subr.bf16.mxu0 0
    %526 = vmatpush1.bf16.msra.mxu0 0
    %527 = vmatprep.subr.bf16.mxu0 0
    %528 = vmatpush1.bf16.msra.mxu0 0
    %529 = vmatprep.subr.bf16.mxu0 0
    %530 = vmatpush1.bf16.msra.mxu0 0
    %531 = vmatprep.subr.bf16.mxu0 0
    %532 = vmatpush1.bf16.msra.mxu0 0
    %533 = vmatprep.mubr.bf16.mxu0 0
    %534 = vmatmul.mubr.bf16.gmra.mrb[0].mxu0 %v402
    %v535 = vpop.f32.mrb[0].mxu0
    %v536 = vadd.f32 0.0, %v535
    %v537 = vpop.f32.mrb[0].mxu0
    %v538 = vpop.f32.mrb[0].mxu0
    %v539 = vadd.f32 0.0, %v538
    %v540 = vpop.f32.mrb[0].mxu0
    %541 = vmatprep.mubr.bf16.mxu0 0
    %542 = vmatmul.mubr.bf16.gmra.mrb[0].mxu0 %v405
    %v543 = vpop.f32.mrb[0].mxu0
    %v544 = vadd.f32 0.0, %v543
    %v545 = vpop.f32.mrb[0].mxu0
    %v546 = vpop.f32.mrb[0].mxu0
    %v547 = vadd.f32 0.0, %v546
    %v548 = vpop.f32.mrb[0].mxu0
    %549 = vmatprep.mubr.bf16.mxu0 0
    %550 = vmatmul.mubr.bf16.gmra.mrb[0].mxu0 %v408
    %v551 = vpop.f32.mrb[0].mxu0
    %v552 = vadd.f32 0.0, %v551
    %v553 = vpop.f32.mrb[0].mxu0
    %v554 = vpop.f32.mrb[0].mxu0
    %v555 = vadd.f32 0.0, %v554
    %v556 = vpop.f32.mrb[0].mxu0
    %557 = vmatprep.mubr.bf16.mxu0 0
    %558 = vmatmul.mubr.bf16.gmra.mrb[0].mxu0 %v411
    %v559 = vpop.f32.mrb[0].mxu0
    %v560 = vadd.f32 0.0, %v559
    %v561 = vpop.f32.mrb[0].mxu0
    %v562 = vpop.f32.mrb[0].mxu0
    %v563 = vadd.f32 0.0, %v562
    %v564 = vpop.f32.mrb[0].mxu0
    %565 = vmatprep.mubr.bf16.mxu0 0
    %566 = vmatmul.mubr.bf16.gmra.mrb[0].mxu0 %v414
    %v567 = vpop.f32.mrb[0].mxu0
    %v568 = vadd.f32 0.0, %v567
    %v569 = vpop.f32.mrb[0].mxu0
    %v570 = vpop.f32.mrb[0].mxu0
    %v571 = vadd.f32 0.0, %v570
    %v572 = vpop.f32.mrb[0].mxu0
    %573 = vmatprep.mubr.bf16.mxu0 0
    %574 = vmatmul.mubr.bf16.gmra.mrb[0].mxu0 %v417
    %v575 = vpop.f32.mrb[0].mxu0
    %v576 = vadd.f32 0.0, %v575
    %v577 = vpop.f32.mrb[0].mxu0
    %v578 = vpop.f32.mrb[0].mxu0
    %v579 = vadd.f32 0.0, %v578
    %v580 = vpop.f32.mrb[0].mxu0
    %581 = vmatprep.mubr.bf16.mxu0 0
    %582 = vmatmul.mubr.bf16.gmra.mrb[0].mxu0 %v420
    %v583 = vpop.f32.mrb[0].mxu0
    %v584 = vadd.f32 0.0, %v583
    %v585 = vpop.f32.mrb[0].mxu0
    %v586 = vpop.f32.mrb[0].mxu0
    %v587 = vadd.f32 0.0, %v586
    %v588 = vpop.f32.mrb[0].mxu0
    %589 = vmatprep.mubr.bf16.mxu0 0
    %590 = vmatmul.mubr.bf16.gmra.mrb[0].mxu0 %v423
    %v591 = vpop.f32.mrb[0].mxu0
    %v592 = vadd.f32 0.0, %v591
    %v593 = vpop.f32.mrb[0].mxu0
    %v594 = vpop.f32.mrb[0].mxu0
    %v595 = vadd.f32 0.0, %v594
    %v596 = vpop.f32.mrb[0].mxu0
    %597 = vmatprep.mubr.bf16.mxu0 0
    %598 = vmatmul.mubr.bf16.gmra.mrb[0].mxu0 %v426
    %v599 = vpop.f32.mrb[0].mxu0
    %v600 = vadd.f32 0.0, %v599
    %v601 = vpop.f32.mrb[0].mxu0
    %v602 = vpop.f32.mrb[0].mxu0
    %v603 = vadd.f32 0.0, %v602
    %v604 = vpop.f32.mrb[0].mxu0
    %605 = vmatprep.mubr.bf16.mxu0 0
    %606 = vmatmul.mubr.bf16.gmra.mrb[0].mxu0 %v429
    %v607 = vpop.f32.mrb[0].mxu0
    %v608 = vadd.f32 0.0, %v607
    %v609 = vpop.f32.mrb[0].mxu0
    %v610 = vpop.f32.mrb[0].mxu0
    %v611 = vadd.f32 0.0, %v610
    %v612 = vpop.f32.mrb[0].mxu0
    %613 = vmatprep.mubr.bf16.mxu0 0
    %614 = vmatmul.mubr.bf16.gmra.mrb[0].mxu0 %v432
    %v615 = vpop.f32.mrb[0].mxu0
    %v616 = vadd.f32 0.0, %v615
    %v617 = vpop.f32.mrb[0].mxu0
    %v618 = vpop.f32.mrb[0].mxu0
    %v619 = vadd.f32 0.0, %v618
    %v620 = vpop.f32.mrb[0].mxu0
    %621 = vmatprep.mubr.bf16.mxu0 0
    %622 = vmatmul.mubr.bf16.gmra.mrb[0].mxu0 %v435
    %v623 = vpop.f32.mrb[0].mxu0
    %v624 = vadd.f32 0.0, %v623
    %v625 = vpop.f32.mrb[0].mxu0
    %v626 = vpop.f32.mrb[0].mxu0
    %v627 = vadd.f32 0.0, %v626
    %v628 = vpop.f32.mrb[0].mxu0
    %629 = vmatprep.mubr.bf16.mxu0 0
    %630 = vmatmul.mubr.bf16.gmra.mrb[0].mxu0 %v438
    %v631 = vpop.f32.mrb[0].mxu0
    %v632 = vadd.f32 0.0, %v631
    %v633 = vpop.f32.mrb[0].mxu0
    %v634 = vpop.f32.mrb[0].mxu0
    %v635 = vadd.f32 0.0, %v634
    %v636 = vpop.f32.mrb[0].mxu0
    %637 = vmatprep.mubr.bf16.mxu0 0
    %638 = vmatmul.mubr.bf16.gmra.mrb[0].mxu0 %v441
    %v639 = vpop.f32.mrb[0].mxu0
    %v640 = vadd.f32 0.0, %v639
    %v641 = vpop.f32.mrb[0].mxu0
    %v642 = vpop.f32.mrb[0].mxu0
    %v643 = vadd.f32 0.0, %v642
    %v644 = vpop.f32.mrb[0].mxu0
    %645 = vmatprep.mubr.bf16.mxu0 0
    %646 = vmatmul.mubr.bf16.gmra.mrb[0].mxu0 %v444
    %v647 = vpop.f32.mrb[0].mxu0
    %v648 = vadd.f32 0.0, %v647
    %v649 = vpop.f32.mrb[0].mxu0
    %v650 = vpop.f32.mrb[0].mxu0
    %v651 = vadd.f32 0.0, %v650
    %v652 = vpop.f32.mrb[0].mxu0
    %653 = vmatprep.mubr.bf16.mxu0 0
    %654 = vmatmul.mubr.bf16.gmra.mrb[0].mxu0 %v447
    %v655 = vpop.f32.mrb[0].mxu0
    %v656 = vadd.f32 0.0, %v655
    %v657 = vpop.f32.mrb[0].mxu0
    %v658 = vpop.f32.mrb[0].mxu0
    %v659 = vadd.f32 0.0, %v658
    %v660 = vpop.f32.mrb[0].mxu0
    %661 = vmatprep.mubr.bf16.mxu0 0
    %662 = vmatmul.mubr.bf16.gmra.mrb[0].mxu0 %v450
    %v663 = vpop.f32.mrb[0].mxu0
    %v664 = vadd.f32 0.0, %v663
    %v665 = vpop.f32.mrb[0].mxu0
    %v666 = vpop.f32.mrb[0].mxu0
    %v667 = vadd.f32 0.0, %v666
    %v668 = vpop.f32.mrb[0].mxu0
    %669 = vmatprep.mubr.bf16.mxu0 0
    %670 = vmatmul.mubr.bf16.gmra.mrb[0].mxu0 %v453
    %v671 = vpop.f32.mrb[0].mxu0
    %v672 = vadd.f32 0.0, %v671
    %v673 = vpop.f32.mrb[0].mxu0
    %v674 = vpop.f32.mrb[0].mxu0
    %v675 = vadd.f32 0.0, %v674
    %v676 = vpop.f32.mrb[0].mxu0
    %677 = vmatprep.mubr.bf16.mxu0 0
    %678 = vmatmul.mubr.bf16.gmra.mrb[0].mxu0 %v456
    %v679 = vpop.f32.mrb[0].mxu0
    %v680 = vadd.f32 0.0, %v679
    %v681 = vpop.f32.mrb[0].mxu0
    %v682 = vpop.f32.mrb[0].mxu0
    %v683 = vadd.f32 0.0, %v682
    %v684 = vpop.f32.mrb[0].mxu0
    %685 = vmatprep.mubr.bf16.mxu0 0
    %686 = vmatmul.mubr.bf16.gmra.mrb[0].mxu0 %v459
    %v687 = vpop.f32.mrb[0].mxu0
    %v688 = vadd.f32 0.0, %v687
    %v689 = vpop.f32.mrb[0].mxu0
    %v690 = vpop.f32.mrb[0].mxu0
    %v691 = vadd.f32 0.0, %v690
    %v692 = vpop.f32.mrb[0].mxu0
    %693 = vmatprep.mubr.bf16.mxu0 0
    %694 = vmatmul.mubr.bf16.gmra.mrb[0].mxu0 %v462
    %v695 = vpop.f32.mrb[0].mxu0
    %v696 = vadd.f32 0.0, %v695
    %v697 = vpop.f32.mrb[0].mxu0
    %v698 = vpop.f32.mrb[0].mxu0
    %v699 = vadd.f32 0.0, %v698
    %v700 = vpop.f32.mrb[0].mxu0
    %701 = vmatprep.mubr.bf16.mxu0 0
    %702 = vmatmul.mubr.bf16.gmra.mrb[0].mxu0 %v465
    %v703 = vpop.f32.mrb[0].mxu0
    %v704 = vadd.f32 0.0, %v703
    %v705 = vpop.f32.mrb[0].mxu0
    %v706 = vpop.f32.mrb[0].mxu0
    %v707 = vadd.f32 0.0, %v706
    %v708 = vpop.f32.mrb[0].mxu0
    %709 = vmatprep.mubr.bf16.mxu0 0
    %710 = vmatmul.mubr.bf16.gmra.mrb[0].mxu0 %v468
    %v711 = vpop.f32.mrb[0].mxu0
    %v712 = vadd.f32 0.0, %v711
    %v713 = vpop.f32.mrb[0].mxu0
    %v714 = vpop.f32.mrb[0].mxu0
    %v715 = vadd.f32 0.0, %v714
    %v716 = vpop.f32.mrb[0].mxu0
    %717 = vmatprep.mubr.bf16.mxu0 0
    %718 = vmatmul.mubr.bf16.gmra.mrb[0].mxu0 %v471
    %v719 = vpop.f32.mrb[0].mxu0
    %v720 = vadd.f32 0.0, %v719
    %v721 = vpop.f32.mrb[0].mxu0
    %v722 = vpop.f32.mrb[0].mxu0
    %v723 = vadd.f32 0.0, %v722
    %v724 = vpop.f32.mrb[0].mxu0
    %725 = vmatprep.mubr.bf16.mxu0 0
    %726 = vmatmul.mubr.bf16.gmra.mrb[0].mxu0 %v474
    %v727 = vpop.f32.mrb[0].mxu0
    %v728 = vadd.f32 0.0, %v727
    %v729 = vpop.f32.mrb[0].mxu0
    %v730 = vpop.f32.mrb[0].mxu0
    %v731 = vadd.f32 0.0, %v730
    %v732 = vpop.f32.mrb[0].mxu0
    %733 = vmatprep.mubr.bf16.mxu0 0
    %734 = vmatmul.mubr.bf16.gmra.mrb[0].mxu0 %v477
    %v735 = vpop.f32.mrb[0].mxu0
    %v736 = vadd.f32 0.0, %v735
    %v737 = vpop.f32.mrb[0].mxu0
    %v738 = vpop.f32.mrb[0].mxu0
    %v739 = vadd.f32 0.0, %v738
    %v740 = vpop.f32.mrb[0].mxu0
    %741 = vmatprep.mubr.bf16.mxu0 0
    %742 = vmatmul.mubr.bf16.gmra.mrb[0].mxu0 %v480
    %v743 = vpop.f32.mrb[0].mxu0
    %v744 = vadd.f32 0.0, %v743
    %v745 = vpop.f32.mrb[0].mxu0
    %v746 = vpop.f32.mrb[0].mxu0
    %v747 = vadd.f32 0.0, %v746
    %v748 = vpop.f32.mrb[0].mxu0
    %749 = vmatprep.mubr.bf16.mxu0 0
    %750 = vmatmul.mubr.bf16.gmra.mrb[0].mxu0 %v483
    %v751 = vpop.f32.mrb[0].mxu0
    %v752 = vadd.f32 0.0, %v751
    %v753 = vpop.f32.mrb[0].mxu0
    %v754 = vpop.f32.mrb[0].mxu0
    %v755 = vadd.f32 0.0, %v754
    %v756 = vpop.f32.mrb[0].mxu0
    %757 = vmatprep.mubr.bf16.mxu0 0
    %758 = vmatmul.mubr.bf16.gmra.mrb[0].mxu0 %v486
    %v759 = vpop.f32.mrb[0].mxu0
    %v760 = vadd.f32 0.0, %v759
    %v761 = vpop.f32.mrb[0].mxu0
    %v762 = vpop.f32.mrb[0].mxu0
    %v763 = vadd.f32 0.0, %v762
    %v764 = vpop.f32.mrb[0].mxu0
    %765 = vmatprep.mubr.bf16.mxu0 0
    %766 = vmatmul.mubr.bf16.gmra.mrb[0].mxu0 %v489
    %v767 = vpop.f32.mrb[0].mxu0
    %v768 = vadd.f32 0.0, %v767
    %v769 = vpop.f32.mrb[0].mxu0
    %v770 = vpop.f32.mrb[0].mxu0
    %v771 = vadd.f32 0.0, %v770
    %v772 = vpop.f32.mrb[0].mxu0
    %773 = vmatprep.mubr.bf16.mxu0 0
    %774 = vmatmul.mubr.bf16.gmra.mrb[0].mxu0 %v492
    %v775 = vpop.f32.mrb[0].mxu0
    %v776 = vadd.f32 0.0, %v775
    %v777 = vpop.f32.mrb[0].mxu0
    %v778 = vpop.f32.mrb[0].mxu0
    %v779 = vadd.f32 0.0, %v778
    %v780 = vpop.f32.mrb[0].mxu0
    %781 = vmatprep.mubr.bf16.mxu0 0
    %782 = vmatmul.mubr.bf16.gmra.mrb[0].mxu0 %v495
    %v783 = vpop.f32.mrb[0].mxu0
    %v784 = vadd.f32 0.0, %v783
    %v785 = vpop.f32.mrb[0].mxu0
    %v786 = vpop.f32.mrb[0].mxu0
    %v787 = vadd.f32 0.0, %v786
    %v788 = vpop.f32.mrb[0].mxu0
    %789 = vdwg.mxu0
    %v790 = vadd.f32 %v84, %v536
    %v791 = vadd.f32 %v85, %v539
    %v792 = vadd.f32 %v86, %v544
    %v793 = vadd.f32 %v87, %v547
    %v794 = vadd.f32 %v88, %v552
    %v795 = vadd.f32 %v89, %v555
    %v796 = vadd.f32 %v90, %v560
    %v797 = vadd.f32 %v91, %v563
    %v798 = vadd.f32 %v92, %v568
    %v799 = vadd.f32 %v93, %v571
    %v800 = vadd.f32 %v94, %v576
    %v801 = vadd.f32 %v95, %v579
    %v802 = vadd.f32 %v96, %v584
    %v803 = vadd.f32 %v97, %v587
    %v804 = vadd.f32 %v98, %v592
    %v805 = vadd.f32 %v99, %v595
    %v806 = vadd.f32 %v100, %v600
    %v807 = vadd.f32 %v101, %v603
    %v808 = vadd.f32 %v102, %v608
    %v809 = vadd.f32 %v103, %v611
    %v810 = vadd.f32 %v104, %v616
    %v811 = vadd.f32 %v105, %v619
    %v812 = vadd.f32 %v106, %v624
    %v813 = vadd.f32 %v107, %v627
    %v814 = vadd.f32 %v108, %v632
    %v815 = vadd.f32 %v109, %v635
    %v816 = vadd.f32 %v110, %v640
    %v817 = vadd.f32 %v111, %v643
    %v818 = vadd.f32 %v112, %v648
    %v819 = vadd.f32 %v113, %v651
    %v820 = vadd.f32 %v114, %v656
    %v821 = vadd.f32 %v115, %v659
    %v822 = vadd.f32 %v116, %v664
    %v823 = vadd.f32 %v117, %v667
    %v824 = vadd.f32 %v118, %v672
    %v825 = vadd.f32 %v119, %v675
    %v826 = vadd.f32 %v120, %v680
    %v827 = vadd.f32 %v121, %v683
    %v828 = vadd.f32 %v122, %v688
    %v829 = vadd.f32 %v123, %v691
    %v830 = vadd.f32 %v124, %v696
    %v831 = vadd.f32 %v125, %v699
    %v832 = vadd.f32 %v126, %v704
    %v833 = vadd.f32 %v127, %v707
    %v834 = vadd.f32 %v128, %v712
    %v835 = vadd.f32 %v129, %v715
    %v836 = vadd.f32 %v130, %v720
    %v837 = vadd.f32 %v131, %v723
    %v838 = vadd.f32 %v132, %v728
    %v839 = vadd.f32 %v133, %v731
    %v840 = vadd.f32 %v134, %v736
    %v841 = vadd.f32 %v135, %v739
    %v842 = vadd.f32 %v136, %v744
    %v843 = vadd.f32 %v137, %v747
    %v844 = vadd.f32 %v138, %v752
    %v845 = vadd.f32 %v139, %v755
    %v846 = vadd.f32 %v140, %v760
    %v847 = vadd.f32 %v141, %v763
    %v848 = vadd.f32 %v142, %v768
    %v849 = vadd.f32 %v143, %v771
    %v850 = vadd.f32 %v144, %v776
    %v851 = vadd.f32 %v145, %v779
    %v852 = vadd.f32 %v146, %v784
    %v853 = vadd.f32 %v147, %v787
    %854 = vst [vmem:[#allocation2] sm:$0xff] %v790
    %855 = vst [vmem:[#allocation2 + $0x8] sm:$0xff] %v791
    %856 = vst [vmem:[#allocation2 + $0x10] sm:$0xff] %v792
    %857 = vst [vmem:[#allocation2 + $0x18] sm:$0xff] %v793
    %858 = vst [vmem:[#allocation2 + $0x20] sm:$0xff] %v794
    %859 = vst [vmem:[#allocation2 + $0x28] sm:$0xff] %v795
    %860 = vst [vmem:[#allocation2 + $0x30] sm:$0xff] %v796
    %861 = vst [vmem:[#allocation2 + $0x38] sm:$0xff] %v797
    %862 = vst [vmem:[#allocation2 + $0x40] sm:$0xff] %v798
    %863 = vst [vmem:[#allocation2 + $0x48] sm:$0xff] %v799
    %864 = vst [vmem:[#allocation2 + $0x50] sm:$0xff] %v800
    %865 = vst [vmem:[#allocation2 + $0x58] sm:$0xff] %v801
    %866 = vst [vmem:[#allocation2 + $0x60] sm:$0xff] %v802
    %867 = vst [vmem:[#allocation2 + $0x68] sm:$0xff] %v803
    %868 = vst [vmem:[#allocation2 + $0x70] sm:$0xff] %v804
    %869 = vst [vmem:[#allocation2 + $0x78] sm:$0xff] %v805
    %870 = vst [vmem:[#allocation2 + $0x80] sm:$0xff] %v806
    %871 = vst [vmem:[#allocation2 + $0x88] sm:$0xff] %v807
    %872 = vst [vmem:[#allocation2 + $0x90] sm:$0xff] %v808
    %873 = vst [vmem:[#allocation2 + $0x98] sm:$0xff] %v809
    %874 = vst [vmem:[#allocation2 + $0xa0] sm:$0xff] %v810
    %875 = vst [vmem:[#allocation2 + $0xa8] sm:$0xff] %v811
    %876 = vst [vmem:[#allocation2 + $0xb0] sm:$0xff] %v812
    %877 = vst [vmem:[#allocation2 + $0xb8] sm:$0xff] %v813
    %878 = vst [vmem:[#allocation2 + $0xc0] sm:$0xff] %v814
    %879 = vst [vmem:[#allocation2 + $0xc8] sm:$0xff] %v815
    %880 = vst [vmem:[#allocation2 + $0xd0] sm:$0xff] %v816
    %881 = vst [vmem:[#allocation2 + $0xd8] sm:$0xff] %v817
    %882 = vst [vmem:[#allocation2 + $0xe0] sm:$0xff] %v818
    %883 = vst [vmem:[#allocation2 + $0xe8] sm:$0xff] %v819
    %884 = vst [vmem:[#allocation2 + $0xf0] sm:$0xff] %v820
    %885 = vst [vmem:[#allocation2 + $0xf8] sm:$0xff] %v821
    %886 = vst [vmem:[#allocation2 + $0x100] sm:$0xff] %v822
    %887 = vst [vmem:[#allocation2 + $0x108] sm:$0xff] %v823
    %888 = vst [vmem:[#allocation2 + $0x110] sm:$0xff] %v824
    %889 = vst [vmem:[#allocation2 + $0x118] sm:$0xff] %v825
    %890 = vst [vmem:[#allocation2 + $0x120] sm:$0xff] %v826
    %891 = vst [vmem:[#allocation2 + $0x128] sm:$0xff] %v827
    %892 = vst [vmem:[#allocation2 + $0x130] sm:$0xff] %v828
    %893 = vst [vmem:[#allocation2 + $0x138] sm:$0xff] %v829
    %894 = vst [vmem:[#allocation2 + $0x140] sm:$0xff] %v830
    %895 = vst [vmem:[#allocation2 + $0x148] sm:$0xff] %v831
    %896 = vst [vmem:[#allocation2 + $0x150] sm:$0xff] %v832
    %897 = vst [vmem:[#allocation2 + $0x158] sm:$0xff] %v833
    %898 = vst [vmem:[#allocation2 + $0x160] sm:$0xff] %v834
    %899 = vst [vmem:[#allocation2 + $0x168] sm:$0xff] %v835
    %900 = vst [vmem:[#allocation2 + $0x170] sm:$0xff] %v836
    %901 = vst [vmem:[#allocation2 + $0x178] sm:$0xff] %v837
    %902 = vst [vmem:[#allocation2 + $0x180] sm:$0xff] %v838
    %903 = vst [vmem:[#allocation2 + $0x188] sm:$0xff] %v839
    %904 = vst [vmem:[#allocation2 + $0x190] sm:$0xff] %v840
    %905 = vst [vmem:[#allocation2 + $0x198] sm:$0xff] %v841
    %906 = vst [vmem:[#allocation2 + $0x1a0] sm:$0xff] %v842
    %907 = vst [vmem:[#allocation2 + $0x1a8] sm:$0xff] %v843
    %908 = vst [vmem:[#allocation2 + $0x1b0] sm:$0xff] %v844
    %909 = vst [vmem:[#allocation2 + $0x1b8] sm:$0xff] %v845
    %910 = vst [vmem:[#allocation2 + $0x1c0] sm:$0xff] %v846
    %911 = vst [vmem:[#allocation2 + $0x1c8] sm:$0xff] %v847
    %912 = vst [vmem:[#allocation2 + $0x1d0] sm:$0xff] %v848
    %913 = vst [vmem:[#allocation2 + $0x1d8] sm:$0xff] %v849
    %914 = vst [vmem:[#allocation2 + $0x1e0] sm:$0xff] %v850
    %915 = vst [vmem:[#allocation2 + $0x1e8] sm:$0xff] %v851
    %916 = vst [vmem:[#allocation2 + $0x1f0] sm:$0xff] %v852
    %917 = vst [vmem:[#allocation2 + $0x1f8] sm:$0xff] %v853
    // Predicated region
    $region18: #{tpu_custom_call.1} parent=1 // pred_check
      %p918 = pneg %p16
    $region19: #{tpu_custom_call.1} parent=1 // pred_check_branch
      %920 = sbr.rel (%p918) target = $region21
    $region20: #{tpu_custom_call.1} parent=1 // pred_region
      %v921 = vld [vmem:[#allocation2] sm:$0xff]
      %v922 = vld [vmem:[#allocation2 + $0x8] sm:$0xff]
      %v923 = vld [vmem:[#allocation2 + $0x10] sm:$0xff]
      %v924 = vld [vmem:[#allocation2 + $0x18] sm:$0xff]
      %v925 = vld [vmem:[#allocation2 + $0x20] sm:$0xff]
      %v926 = vld [vmem:[#allocation2 + $0x28] sm:$0xff]
      %v927 = vld [vmem:[#allocation2 + $0x30] sm:$0xff]
      %v928 = vld [vmem:[#allocation2 + $0x38] sm:$0xff]
      %v929 = vld [vmem:[#allocation2 + $0x40] sm:$0xff]
      %v930 = vld [vmem:[#allocation2 + $0x48] sm:$0xff]
      %v931 = vld [vmem:[#allocation2 + $0x50] sm:$0xff]
      %v932 = vld [vmem:[#allocation2 + $0x58] sm:$0xff]
      %v933 = vld [vmem:[#allocation2 + $0x60] sm:$0xff]
      %v934 = vld [vmem:[#allocation2 + $0x68] sm:$0xff]
      %v935 = vld [vmem:[#allocation2 + $0x70] sm:$0xff]
      %v936 = vld [vmem:[#allocation2 + $0x78] sm:$0xff]
      %v937 = vld [vmem:[#allocation2 + $0x80] sm:$0xff]
      %v938 = vld [vmem:[#allocation2 + $0x88] sm:$0xff]
      %v939 = vld [vmem:[#allocation2 + $0x90] sm:$0xff]
      %v940 = vld [vmem:[#allocation2 + $0x98] sm:$0xff]
      %v941 = vld [vmem:[#allocation2 + $0xa0] sm:$0xff]
      %v942 = vld [vmem:[#allocation2 + $0xa8] sm:$0xff]
      %v943 = vld [vmem:[#allocation2 + $0xb0] sm:$0xff]
      %v944 = vld [vmem:[#allocation2 + $0xb8] sm:$0xff]
      %v945 = vld [vmem:[#allocation2 + $0xc0] sm:$0xff]
      %v946 = vld [vmem:[#allocation2 + $0xc8] sm:$0xff]
      %v947 = vld [vmem:[#allocation2 + $0xd0] sm:$0xff]
      %v948 = vld [vmem:[#allocation2 + $0xd8] sm:$0xff]
      %v949 = vld [vmem:[#allocation2 + $0xe0] sm:$0xff]
      %v950 = vld [vmem:[#allocation2 + $0xe8] sm:$0xff]
      %v951 = vld [vmem:[#allocation2 + $0xf0] sm:$0xff]
      %v952 = vld [vmem:[#allocation2 + $0xf8] sm:$0xff]
      %v953 = vld [vmem:[#allocation2 + $0x100] sm:$0xff]
      %v954 = vld [vmem:[#allocation2 + $0x108] sm:$0xff]
      %v955 = vld [vmem:[#allocation2 + $0x110] sm:$0xff]
      %v956 = vld [vmem:[#allocation2 + $0x118] sm:$0xff]
      %v957 = vld [vmem:[#allocation2 + $0x120] sm:$0xff]
      %v958 = vld [vmem:[#allocation2 + $0x128] sm:$0xff]
      %v959 = vld [vmem:[#allocation2 + $0x130] sm:$0xff]
      %v960 = vld [vmem:[#allocation2 + $0x138] sm:$0xff]
      %v961 = vld [vmem:[#allocation2 + $0x140] sm:$0xff]
      %v962 = vld [vmem:[#allocation2 + $0x148] sm:$0xff]
      %v963 = vld [vmem:[#allocation2 + $0x150] sm:$0xff]
      %v964 = vld [vmem:[#allocation2 + $0x158] sm:$0xff]
      %v965 = vld [vmem:[#allocation2 + $0x160] sm:$0xff]
      %v966 = vld [vmem:[#allocation2 + $0x168] sm:$0xff]
      %v967 = vld [vmem:[#allocation2 + $0x170] sm:$0xff]
      %v968 = vld [vmem:[#allocation2 + $0x178] sm:$0xff]
      %v969 = vld [vmem:[#allocation2 + $0x180] sm:$0xff]
      %v970 = vld [vmem:[#allocation2 + $0x188] sm:$0xff]
      %v971 = vld [vmem:[#allocation2 + $0x190] sm:$0xff]
      %v972 = vld [vmem:[#allocation2 + $0x198] sm:$0xff]
      %v973 = vld [vmem:[#allocation2 + $0x1a0] sm:$0xff]
      %v974 = vld [vmem:[#allocation2 + $0x1a8] sm:$0xff]
      %v975 = vld [vmem:[#allocation2 + $0x1b0] sm:$0xff]
      %v976 = vld [vmem:[#allocation2 + $0x1b8] sm:$0xff]
      %v977 = vld [vmem:[#allocation2 + $0x1c0] sm:$0xff]
      %v978 = vld [vmem:[#allocation2 + $0x1c8] sm:$0xff]
      %v979 = vld [vmem:[#allocation2 + $0x1d0] sm:$0xff]
      %v980 = vld [vmem:[#allocation2 + $0x1d8] sm:$0xff]
      %v981 = vld [vmem:[#allocation2 + $0x1e0] sm:$0xff]
      %v982 = vld [vmem:[#allocation2 + $0x1e8] sm:$0xff]
      %v983 = vld [vmem:[#allocation2 + $0x1f0] sm:$0xff]
      %v984 = vld [vmem:[#allocation2 + $0x1f8] sm:$0xff]
      %v985 = vld [vmem:[%s2] sm:$0x1]
      %v987 = vlaneseq
      %v988 = vshrl.u32 %v987, 7
      %v989 = vsub.s32 0, %v988
      %v990 = vrot.slane %v985, %v989
      %v992 = vadd.f32 %v921, %v990
      %v993 = vadd.f32 %v922, %v990
      %v994 = vadd.f32 %v923, %v990
      %v995 = vadd.f32 %v924, %v990
      %v996 = vadd.f32 %v925, %v990
      %v997 = vadd.f32 %v926, %v990
      %v998 = vadd.f32 %v927, %v990
      %v999 = vadd.f32 %v928, %v990
      %v1000 = vadd.f32 %v929, %v990
      %v1001 = vadd.f32 %v930, %v990
      %v1002 = vadd.f32 %v931, %v990
      %v1003 = vadd.f32 %v932, %v990
      %v1004 = vadd.f32 %v933, %v990
      %v1005 = vadd.f32 %v934, %v990
      %v1006 = vadd.f32 %v935, %v990
      %v1007 = vadd.f32 %v936, %v990
      %v1008 = vadd.f32 %v937, %v990
      %v1009 = vadd.f32 %v938, %v990
      %v1010 = vadd.f32 %v939, %v990
      %v1011 = vadd.f32 %v940, %v990
      %v1012 = vadd.f32 %v941, %v990
      %v1013 = vadd.f32 %v942, %v990
      %v1014 = vadd.f32 %v943, %v990
      %v1015 = vadd.f32 %v944, %v990
      %v1016 = vadd.f32 %v945, %v990
      %v1017 = vadd.f32 %v946, %v990
      %v1018 = vadd.f32 %v947, %v990
      %v1019 = vadd.f32 %v948, %v990
      %v1020 = vadd.f32 %v949, %v990
      %v1021 = vadd.f32 %v950, %v990
      %v1022 = vadd.f32 %v951, %v990
      %v1023 = vadd.f32 %v952, %v990
      %v1024 = vadd.f32 %v953, %v990
      %v1025 = vadd.f32 %v954, %v990
      %v1026 = vadd.f32 %v955, %v990
      %v1027 = vadd.f32 %v956, %v990
      %v1028 = vadd.f32 %v957, %v990
      %v1029 = vadd.f32 %v958, %v990
      %v1030 = vadd.f32 %v959, %v990
      %v1031 = vadd.f32 %v960, %v990
      %v1032 = vadd.f32 %v961, %v990
      %v1033 = vadd.f32 %v962, %v990
      %v1034 = vadd.f32 %v963, %v990
      %v1035 = vadd.f32 %v964, %v990
      %v1036 = vadd.f32 %v965, %v990
      %v1037 = vadd.f32 %v966, %v990
      %v1038 = vadd.f32 %v967, %v990
      %v1039 = vadd.f32 %v968, %v990
      %v1040 = vadd.f32 %v969, %v990
      %v1041 = vadd.f32 %v970, %v990
      %v1042 = vadd.f32 %v971, %v990
      %v1043 = vadd.f32 %v972, %v990
      %v1044 = vadd.f32 %v973, %v990
      %v1045 = vadd.f32 %v974, %v990
      %v1046 = vadd.f32 %v975, %v990
      %v1047 = vadd.f32 %v976, %v990
      %v1048 = vadd.f32 %v977, %v990
      %v1049 = vadd.f32 %v978, %v990
      %v1050 = vadd.f32 %v979, %v990
      %v1051 = vadd.f32 %v980, %v990
      %v1052 = vadd.f32 %v981, %v990
      %v1053 = vadd.f32 %v982, %v990
      %v1054 = vadd.f32 %v983, %v990
      %v1055 = vadd.f32 %v984, %v990
      %v1056 = vpack.c.bf16 %v993, %v992
      %v1057 = vpack.c.bf16 %v995, %v994
      %v1058 = vpack.c.bf16 %v997, %v996
      %v1059 = vpack.c.bf16 %v999, %v998
      %v1060 = vpack.c.bf16 %v1001, %v1000
      %v1061 = vpack.c.bf16 %v1003, %v1002
      %v1062 = vpack.c.bf16 %v1005, %v1004
      %v1063 = vpack.c.bf16 %v1007, %v1006
      %v1064 = vpack.c.bf16 %v1009, %v1008
      %v1065 = vpack.c.bf16 %v1011, %v1010
      %v1066 = vpack.c.bf16 %v1013, %v1012
      %v1067 = vpack.c.bf16 %v1015, %v1014
      %v1068 = vpack.c.bf16 %v1017, %v1016
      %v1069 = vpack.c.bf16 %v1019, %v1018
      %v1070 = vpack.c.bf16 %v1021, %v1020
      %v1071 = vpack.c.bf16 %v1023, %v1022
      %v1072 = vpack.c.bf16 %v1025, %v1024
      %v1073 = vpack.c.bf16 %v1027, %v1026
      %v1074 = vpack.c.bf16 %v1029, %v1028
      %v1075 = vpack.c.bf16 %v1031, %v1030
      %v1076 = vpack.c.bf16 %v1033, %v1032
      %v1077 = vpack.c.bf16 %v1035, %v1034
      %v1078 = vpack.c.bf16 %v1037, %v1036
      %v1079 = vpack.c.bf16 %v1039, %v1038
      %v1080 = vpack.c.bf16 %v1041, %v1040
      %v1081 = vpack.c.bf16 %v1043, %v1042
      %v1082 = vpack.c.bf16 %v1045, %v1044
      %v1083 = vpack.c.bf16 %v1047, %v1046
      %v1084 = vpack.c.bf16 %v1049, %v1048
      %v1085 = vpack.c.bf16 %v1051, %v1050
      %v1086 = vpack.c.bf16 %v1053, %v1052
      %v1087 = vpack.c.bf16 %v1055, %v1054
      %v1120 = vunpack.c.l.b16 %v1056
      %v1121 = vunpack.c.h.b16 %v1056
      %v1122 = vunpack.c.l.b16 %v1057
      %v1123 = vunpack.c.h.b16 %v1057
      %v1124 = vunpack.c.l.b16 %v1058
      %v1125 = vunpack.c.h.b16 %v1058
      %v1126 = vunpack.c.l.b16 %v1059
      %v1127 = vunpack.c.h.b16 %v1059
      %v1128 = vunpack.c.l.b16 %v1060
      %v1129 = vunpack.c.h.b16 %v1060
      %v1130 = vunpack.c.l.b16 %v1061
      %v1131 = vunpack.c.h.b16 %v1061
      %v1132 = vunpack.c.l.b16 %v1062
      %v1133 = vunpack.c.h.b16 %v1062
      %v1134 = vunpack.c.l.b16 %v1063
      %v1135 = vunpack.c.h.b16 %v1063
      %v1136 = vunpack.c.l.b16 %v1064
      %v1137 = vunpack.c.h.b16 %v1064
      %v1138 = vunpack.c.l.b16 %v1065
      %v1139 = vunpack.c.h.b16 %v1065
      %v1140 = vunpack.c.l.b16 %v1066
      %v1141 = vunpack.c.h.b16 %v1066
      %v1142 = vunpack.c.l.b16 %v1067
      %v1143 = vunpack.c.h.b16 %v1067
      %v1144 = vunpack.c.l.b16 %v1068
      %v1145 = vunpack.c.h.b16 %v1068
      %v1146 = vunpack.c.l.b16 %v1069
      %v1147 = vunpack.c.h.b16 %v1069
      %v1148 = vunpack.c.l.b16 %v1070
      %v1149 = vunpack.c.h.b16 %v1070
      %v1150 = vunpack.c.l.b16 %v1071
      %v1151 = vunpack.c.h.b16 %v1071
      %v1152 = vunpack.c.l.b16 %v1072
      %v1153 = vunpack.c.h.b16 %v1072
      %v1154 = vunpack.c.l.b16 %v1073
      %v1155 = vunpack.c.h.b16 %v1073
      %v1156 = vunpack.c.l.b16 %v1074
      %v1157 = vunpack.c.h.b16 %v1074
      %v1158 = vunpack.c.l.b16 %v1075
      %v1159 = vunpack.c.h.b16 %v1075
      %v1160 = vunpack.c.l.b16 %v1076
      %v1161 = vunpack.c.h.b16 %v1076
      %v1162 = vunpack.c.l.b16 %v1077
      %v1163 = vunpack.c.h.b16 %v1077
      %v1164 = vunpack.c.l.b16 %v1078
      %v1165 = vunpack.c.h.b16 %v1078
      %v1166 = vunpack.c.l.b16 %v1079
      %v1167 = vunpack.c.h.b16 %v1079
      %v1168 = vunpack.c.l.b16 %v1080
      %v1169 = vunpack.c.h.b16 %v1080
      %v1170 = vunpack.c.l.b16 %v1081
      %v1171 = vunpack.c.h.b16 %v1081
      %v1172 = vunpack.c.l.b16 %v1082
      %v1173 = vunpack.c.h.b16 %v1082
      %v1174 = vunpack.c.l.b16 %v1083
      %v1175 = vunpack.c.h.b16 %v1083
      %v1176 = vunpack.c.l.b16 %v1084
      %v1177 = vunpack.c.h.b16 %v1084
      %v1178 = vunpack.c.l.b16 %v1085
      %v1179 = vunpack.c.h.b16 %v1085
      %v1180 = vunpack.c.l.b16 %v1086
      %v1181 = vunpack.c.h.b16 %v1086
      %v1182 = vunpack.c.l.b16 %v1087
      %v1183 = vunpack.c.h.b16 %v1087
      %v1184 = vpack.c.b16 %v1120, %v1120
      %v1185 = vpack.c.b16 %v1121, %v1121
      %v1186 = vpack.c.b16 %v1122, %v1122
      %v1187 = vpack.c.b16 %v1123, %v1123
      %v1188 = vpack.c.b16 %v1124, %v1124
      %v1189 = vpack.c.b16 %v1125, %v1125
      %v1190 = vpack.c.b16 %v1126, %v1126
      %v1191 = vpack.c.b16 %v1127, %v1127
      %v1192 = vpack.c.b16 %v1128, %v1128
      %v1193 = vpack.c.b16 %v1129, %v1129
      %v1194 = vpack.c.b16 %v1130, %v1130
      %v1195 = vpack.c.b16 %v1131, %v1131
      %v1196 = vpack.c.b16 %v1132, %v1132
      %v1197 = vpack.c.b16 %v1133, %v1133
      %v1198 = vpack.c.b16 %v1134, %v1134
      %v1199 = vpack.c.b16 %v1135, %v1135
      %v1200 = vpack.c.b16 %v1136, %v1136
      %v1201 = vpack.c.b16 %v1137, %v1137
      %v1202 = vpack.c.b16 %v1138, %v1138
      %v1203 = vpack.c.b16 %v1139, %v1139
      %v1204 = vpack.c.b16 %v1140, %v1140
      %v1205 = vpack.c.b16 %v1141, %v1141
      %v1206 = vpack.c.b16 %v1142, %v1142
      %v1207 = vpack.c.b16 %v1143, %v1143
      %v1208 = vpack.c.b16 %v1144, %v1144
      %v1209 = vpack.c.b16 %v1145, %v1145
      %v1210 = vpack.c.b16 %v1146, %v1146
      %v1211 = vpack.c.b16 %v1147, %v1147
      %v1212 = vpack.c.b16 %v1148, %v1148
      %v1213 = vpack.c.b16 %v1149, %v1149
      %v1214 = vpack.c.b16 %v1150, %v1150
      %v1215 = vpack.c.b16 %v1151, %v1151
      %v1216 = vpack.c.b16 %v1152, %v1152
      %v1217 = vpack.c.b16 %v1153, %v1153
      %v1218 = vpack.c.b16 %v1154, %v1154
      %v1219 = vpack.c.b16 %v1155, %v1155
      %v1220 = vpack.c.b16 %v1156, %v1156
      %v1221 = vpack.c.b16 %v1157, %v1157
      %v1222 = vpack.c.b16 %v1158, %v1158
      %v1223 = vpack.c.b16 %v1159, %v1159
      %v1224 = vpack.c.b16 %v1160, %v1160
      %v1225 = vpack.c.b16 %v1161, %v1161
      %v1226 = vpack.c.b16 %v1162, %v1162
      %v1227 = vpack.c.b16 %v1163, %v1163
      %v1228 = vpack.c.b16 %v1164, %v1164
      %v1229 = vpack.c.b16 %v1165, %v1165
      %v1230 = vpack.c.b16 %v1166, %v1166
      %v1231 = vpack.c.b16 %v1167, %v1167
      %v1232 = vpack.c.b16 %v1168, %v1168
      %v1233 = vpack.c.b16 %v1169, %v1169
      %v1234 = vpack.c.b16 %v1170, %v1170
      %v1235 = vpack.c.b16 %v1171, %v1171
      %v1236 = vpack.c.b16 %v1172, %v1172
      %v1237 = vpack.c.b16 %v1173, %v1173
      %v1238 = vpack.c.b16 %v1174, %v1174
      %v1239 = vpack.c.b16 %v1175, %v1175
      %v1240 = vpack.c.b16 %v1176, %v1176
      %v1241 = vpack.c.b16 %v1177, %v1177
      %v1242 = vpack.c.b16 %v1178, %v1178
      %v1243 = vpack.c.b16 %v1179, %v1179
      %v1244 = vpack.c.b16 %v1180, %v1180
      %v1245 = vpack.c.b16 %v1181, %v1181
      %v1246 = vpack.c.b16 %v1182, %v1182
      %v1247 = vpack.c.b16 %v1183, %v1183
      %1312 = vst [vmem:[#allocation3] sm:$0xf] %v1184
      %1313 = vst [vmem:[#allocation3 + $0x4] sm:$0xf] %v1185
      %1314 = vst [vmem:[#allocation3 + $0x8] sm:$0xf] %v1186
      %1315 = vst [vmem:[#allocation3 + $0xc] sm:$0xf] %v1187
      %1316 = vst [vmem:[#allocation3 + $0x10] sm:$0xf] %v1188
      %1317 = vst [vmem:[#allocation3 + $0x14] sm:$0xf] %v1189
      %1318 = vst [vmem:[#allocation3 + $0x18] sm:$0xf] %v1190
      %1319 = vst [vmem:[#allocation3 + $0x1c] sm:$0xf] %v1191
      %1320 = vst [vmem:[#allocation3 + $0x20] sm:$0xf] %v1192
      %1321 = vst [vmem:[#allocation3 + $0x24] sm:$0xf] %v1193
      %1322 = vst [vmem:[#allocation3 + $0x28] sm:$0xf] %v1194
      %1323 = vst [vmem:[#allocation3 + $0x2c] sm:$0xf] %v1195
      %1324 = vst [vmem:[#allocation3 + $0x30] sm:$0xf] %v1196
      %1325 = vst [vmem:[#allocation3 + $0x34] sm:$0xf] %v1197
      %1326 = vst [vmem:[#allocation3 + $0x38] sm:$0xf] %v1198
      %1327 = vst [vmem:[#allocation3 + $0x3c] sm:$0xf] %v1199
      %1328 = vst [vmem:[#allocation3 + $0x40] sm:$0xf] %v1200
      %1329 = vst [vmem:[#allocation3 + $0x44] sm:$0xf] %v1201
      %1330 = vst [vmem:[#allocation3 + $0x48] sm:$0xf] %v1202
      %1331 = vst [vmem:[#allocation3 + $0x4c] sm:$0xf] %v1203
      %1332 = vst [vmem:[#allocation3 + $0x50] sm:$0xf] %v1204
      %1333 = vst [vmem:[#allocation3 + $0x54] sm:$0xf] %v1205
      %1334 = vst [vmem:[#allocation3 + $0x58] sm:$0xf] %v1206
      %1335 = vst [vmem:[#allocation3 + $0x5c] sm:$0xf] %v1207
      %1336 = vst [vmem:[#allocation3 + $0x60] sm:$0xf] %v1208
      %1337 = vst [vmem:[#allocation3 + $0x64] sm:$0xf] %v1209
      %1338 = vst [vmem:[#allocation3 + $0x68] sm:$0xf] %v1210
      %1339 = vst [vmem:[#allocation3 + $0x6c] sm:$0xf] %v1211
      %1340 = vst [vmem:[#allocation3 + $0x70] sm:$0xf] %v1212
      %1341 = vst [vmem:[#allocation3 + $0x74] sm:$0xf] %v1213
      %1342 = vst [vmem:[#allocation3 + $0x78] sm:$0xf] %v1214
      %1343 = vst [vmem:[#allocation3 + $0x7c] sm:$0xf] %v1215
      %1344 = vst [vmem:[#allocation3 + $0x80] sm:$0xf] %v1216
      %1345 = vst [vmem:[#allocation3 + $0x84] sm:$0xf] %v1217
      %1346 = vst [vmem:[#allocation3 + $0x88] sm:$0xf] %v1218
      %1347 = vst [vmem:[#allocation3 + $0x8c] sm:$0xf] %v1219
      %1348 = vst [vmem:[#allocation3 + $0x90] sm:$0xf] %v1220
      %1349 = vst [vmem:[#allocation3 + $0x94] sm:$0xf] %v1221
      %1350 = vst [vmem:[#allocation3 + $0x98] sm:$0xf] %v1222
      %1351 = vst [vmem:[#allocation3 + $0x9c] sm:$0xf] %v1223
      %1352 = vst [vmem:[#allocation3 + $0xa0] sm:$0xf] %v1224
      %1353 = vst [vmem:[#allocation3 + $0xa4] sm:$0xf] %v1225
      %1354 = vst [vmem:[#allocation3 + $0xa8] sm:$0xf] %v1226
      %1355 = vst [vmem:[#allocation3 + $0xac] sm:$0xf] %v1227
      %1356 = vst [vmem:[#allocation3 + $0xb0] sm:$0xf] %v1228
      %1357 = vst [vmem:[#allocation3 + $0xb4] sm:$0xf] %v1229
      %1358 = vst [vmem:[#allocation3 + $0xb8] sm:$0xf] %v1230
      %1359 = vst [vmem:[#allocation3 + $0xbc] sm:$0xf] %v1231
      %1360 = vst [vmem:[#allocation3 + $0xc0] sm:$0xf] %v1232
      %1361 = vst [vmem:[#allocation3 + $0xc4] sm:$0xf] %v1233
      %1362 = vst [vmem:[#allocation3 + $0xc8] sm:$0xf] %v1234
      %1363 = vst [vmem:[#allocation3 + $0xcc] sm:$0xf] %v1235
      %1364 = vst [vmem:[#allocation3 + $0xd0] sm:$0xf] %v1236
      %1365 = vst [vmem:[#allocation3 + $0xd4] sm:$0xf] %v1237
      %1366 = vst [vmem:[#allocation3 + $0xd8] sm:$0xf] %v1238
      %1367 = vst [vmem:[#allocation3 + $0xdc] sm:$0xf] %v1239
      %1368 = vst [vmem:[#allocation3 + $0xe0] sm:$0xf] %v1240
      %1369 = vst [vmem:[#allocation3 + $0xe4] sm:$0xf] %v1241
      %1370 = vst [vmem:[#allocation3 + $0xe8] sm:$0xf] %v1242
      %1371 = vst [vmem:[#allocation3 + $0xec] sm:$0xf] %v1243
      %1372 = vst [vmem:[#allocation3 + $0xf0] sm:$0xf] %v1244
      %1373 = vst [vmem:[#allocation3 + $0xf4] sm:$0xf] %v1245
      %1374 = vst [vmem:[#allocation3 + $0xf8] sm:$0xf] %v1246
      %1375 = vst [vmem:[#allocation3 + $0xfc] sm:$0xf] %v1247
    $region21: #{tpu_custom_call.1} parent=1 // pred_fallthru
      _
    // Predicated region
    $region22: #{tpu_custom_call.1} parent=1 // pred_check
      _
    $region23: #{tpu_custom_call.1} parent=1 // pred_check_branch
      %1377 = sbr.rel (0) target = $region25
    $region24: #{tpu_custom_call.1} parent=1 // pred_region
      %s1379 = ssub.s32 4096, 4096
      %1380 = vsyncadd [#allocation4], %s1379
      %s1381 = sshll.u32 [#allocation3], 4
      %s1382 = int_to_ptr.vmem [resolvable:$true] %s1381
      %1387 = dma.vmem_to_hbm [thread:$0]  %s1382, 4096, %s3, [#allocation4], 64, 64, 4
    $region25: #{tpu_custom_call.1} parent=1 // pred_fallthru
      _
    // Predicated region
    $region26: #{tpu_custom_call.1} parent=1 // pred_check
      _
    $region27: #{tpu_custom_call.1} parent=1 // pred_check_branch
      %1389 = sbr.rel (0) target = $region29
    $region28: #{tpu_custom_call.1} parent=1 // pred_region
      %1390 = dma.done [#allocation4], 4096
    $region29: #{tpu_custom_call.1} parent=1 // pred_fallthru
      _
    %1391 = vsyncpa [#allocation4], 1

</llo_original>
